<compile_context>
chip_gen: v5e
topology: v5e:2x2
jax: 0.10.0
libtpu: 0.0.40
codegen_flags: <defaults>
</compile_context>

<pallas_src>
import functools
import math

import jax
import jax.numpy as jnp
from jax.experimental import pallas as pl
from jax.experimental.pallas import tpu as pltpu


# ----------------------------- math helpers -----------------------------

def _layer_norm(x, gamma, beta, eps=1e-5):
    mu = jnp.mean(x, axis=-1, keepdims=True)
    var = jnp.mean((x - mu) ** 2, axis=-1, keepdims=True)
    return (x - mu) * jax.lax.rsqrt(var + eps) * gamma + beta


def _gelu_exact(x):
    # nn.GELU() default = exact erf formulation.
    # TODO(synk): tanh-approx GELU would route through the EUP on v5e but deviates
    # from PyTorch's default exact-erf GELU, so it is not used here.
    return 0.5 * x * (1.0 + jax.lax.erf(x * (1.0 / math.sqrt(2.0))))


# ----------------------------- hardware sizing -----------------------------

def _tpu_generation_params():
    """Return (mxu_width, physical_vmem_bytes) with conservative fallbacks."""
    mxu, vmem = 128, 64 * 1024 * 1024
    try:
        kind = jax.devices()[0].device_kind.lower()
    except Exception:
        kind = ""
    if any(t in kind for t in ("v2", "v3", "v4", "v5")):
        mxu, vmem = 128, 128 * 1024 * 1024
    elif "v6" in kind:
        mxu, vmem = 256, 128 * 1024 * 1024
    elif "7" in kind:
        mxu, vmem = 256, 64 * 1024 * 1024
    try:
        cap = getattr(pltpu.get_tpu_info(), "vmem_capacity_bytes", None)
        if cap:
            vmem = int(cap)
    except Exception:
        pass
    return mxu, vmem


def _heads_per_group(num_heads, dk, S, mxu_width, vmem_bytes):
    """Largest divisor of num_heads whose group contraction width (~gdk) fills the
    MXU and whose double-buffered bf16 bias block stays within a VMEM fraction."""
    target = max(1, mxu_width // max(dk, 1))
    best = 1
    for cand in range(1, num_heads + 1):
        if num_heads % cand:
            continue
        bias_bytes = 2 * cand * S * S * 2  # double-buffered bf16 bias stream
        if cand <= target and bias_bytes <= vmem_bytes // 3:
            best = cand
    return best


def _largest_divisor_leq(n, cap):
    best = 1
    for d in range(1, n + 1):
        if n % d == 0 and d <= cap:
            best = d
    return best


def _attn_resident_bytes(S, H, G, gdk):
    b = 0
    b += 2 * S * H * 4                                            # x (double-buffered)
    b += 2 * G * S * S * 2                                        # bf16 bias stream
    b += 2 * (H * 3 * gdk * 2 + 3 * gdk * 4 + gdk * H * 2)        # per-group weights
    b += 3 * H * 4                                                # g1 / b1 / bo
    b += 2 * S * H * 4                                            # out
    b += S * H * 2 + S * H * 4 + S * 3 * gdk * 2 + S * gdk * 2    # scratches
    return b


def _ffn_resident_bytes(S, H, tf):
    b = 0
    b += 2 * S * H * 4 + 2 * S * H * 4                            # x1 in, out
    b += 2 * (H * tf * 2 + tf * H * 2 + tf * 4)                   # w1 / w2 / c1 tiles
    b += 3 * H * 4                                                # g2 / b2 / c2
    b += S * H * 2 + S * H * 4                                    # scratches
    b += S * tf * 4                                               # f32 hidden tile headroom
    return b


def _vmem_limit(need_bytes, vmem_physical):
    cap = max(vmem_physical - 12 * 1024 * 1024, 32 * 1024 * 1024)
    want = int(need_bytes * 1.5) + (4 << 20)
    return int(min(max(want, 32 * 1024 * 1024), cap))


def _bspec(shape, index_map, buffer_count=None):
    if buffer_count is None:
        return pl.BlockSpec(shape, index_map)
    return pl.BlockSpec(shape, index_map, pipeline_mode=pl.Buffered(buffer_count))


# ----------------------------- kernels -----------------------------

def _attn_kernel(x_ref, bias_ref, g1_ref, b1_ref, wqkv_ref, bqkv_ref, wo_ref, bo_ref,
                 out_ref, y_scr, acc_scr, qkv_scr, ctx_scr, *, heads_per_group, dk):
    hg = pl.program_id(1)
    last = pl.num_programs(1) - 1
    gdk = heads_per_group * dk
    scale = dk ** (-0.5)

    # ---- per-batch init (first head-group): LN1 + zero attention accumulator ----
    @pl.when(hg == 0)
    def _init():
        x = x_ref[0]                                         # (S, H) f32
        y = _layer_norm(x, g1_ref[...], b1_ref[...])
        y_scr[...] = y.astype(y_scr.dtype)                   # bf16, matmul-ready
        acc_scr[...] = jnp.zeros_like(acc_scr)

    # ---- fused Q/K/V projection for this head-group: one MXU matmul ----
    qkv = jnp.dot(y_scr[...], wqkv_ref[0],
                  preferred_element_type=jnp.float32) + bqkv_ref[0]   # (S, 3*gdk) f32
    qkv_scr[...] = qkv.astype(qkv_scr.dtype)                 # ref-sliced below

    # TODO(synk): flash-style KV tiling (online softmax) for long S; the full (S,S)
    # f32 score block per head is materialized here.
    for i in range(heads_per_group):                         # static loop over heads
        qh = qkv_scr[:, pl.ds(i * dk, dk)]
        kh = qkv_scr[:, pl.ds(gdk + i * dk, dk)]
        vh = qkv_scr[:, pl.ds(2 * gdk + i * dk, dk)]

        s = (jnp.dot(qh, kh.T, preferred_element_type=jnp.float32) * scale
             + bias_ref[0, i].astype(jnp.float32))
        s = s - jnp.max(s, axis=-1, keepdims=True)           # f32 softmax
        p = jnp.exp(s)
        p = p * pl.reciprocal(jnp.sum(p, axis=-1, keepdims=True), approx=True)

        ctx = jnp.dot(p.astype(jnp.bfloat16), vh,
                      preferred_element_type=jnp.float32)    # (S, dk) f32
        ctx_scr[:, pl.ds(i * dk, dk)] = ctx.astype(ctx_scr.dtype)

    # single (S,gdk) x (gdk,H) Wo fold per head-group (one accumulator RMW)
    acc_scr[...] += jnp.dot(ctx_scr[...], wo_ref[0],
                            preferred_element_type=jnp.float32)

    # ---- last head-group: attention residual ----
    @pl.when(hg == last)
    def _finalize():
        out_ref[0] = (x_ref[0] + acc_scr[...] + bo_ref[...]).astype(out_ref.dtype)


def _ffn_kernel(x1_ref, g2_ref, b2_ref, w1_ref, c1_ref, w2_ref, c2_ref,
                out_ref, y2_scr, acc_scr):
    f = pl.program_id(1)
    last = pl.num_programs(1) - 1

    @pl.when(f == 0)
    def _init():
        x1 = x1_ref[0]
        y2 = _layer_norm(x1, g2_ref[...], b2_ref[...])
        y2_scr[...] = y2.astype(y2_scr.dtype)
        acc_scr[...] = jnp.zeros_like(acc_scr)

    hdn = jnp.dot(y2_scr[...], w1_ref[...],
                  preferred_element_type=jnp.float32) + c1_ref[...]   # (S, tf) f32
    hdn = _gelu_exact(hdn)
    acc_scr[...] += jnp.dot(hdn.astype(jnp.bfloat16), w2_ref[...],
                            preferred_element_type=jnp.float32)

    @pl.when(f == last)
    def _finalize():
        out_ref[0] = (x1_ref[0] + acc_scr[...] + c2_ref[...]).astype(out_ref.dtype)


# ----------------------------- wrapper -----------------------------

def encoder_layer(x, attn_bias, params, num_heads):
    B, S, H = x.shape
    F = params["w1"].shape[1]
    dk = H // num_heads
    mxu, vmem_phys = _tpu_generation_params()

    G = _heads_per_group(num_heads, dk, S, mxu, vmem_phys)
    nG = num_heads // G
    gdk = G * dk
    tf = _largest_divisor_leq(F, max(8 * mxu, 512))       # F-tile for the FFN kernel
    nF = F // tf
    wdt = jnp.bfloat16

    # ---- one-time host-side weight packing / casting ----
    def group_cols(w):  # (H, num_heads*dk) -> (nG, H, gdk)
        return w.reshape(H, nG, gdk).transpose(1, 0, 2)

    wqkv = jnp.concatenate(
        [group_cols(params["wq"]), group_cols(params["wk"]), group_cols(params["wv"])],
        axis=-1).astype(wdt)                                            # (nG, H, 3*gdk)
    bqkv = jnp.concatenate(
        [params["bq"].reshape(nG, gdk),
         params["bk"].reshape(nG, gdk),
         params["bv"].reshape(nG, gdk)], axis=-1)[:, None, :]           # (nG, 1, 3*gdk) f32
    wo = params["wo"].reshape(nG, gdk, H).astype(wdt)                   # (nG, gdk, H)
    w1 = params["w1"].astype(wdt)
    w2 = params["w2"].astype(wdt)
    bias_bf16 = attn_bias.astype(jnp.bfloat16)                          # halved DMA/VMEM
    # TODO(synk): optional fp8 w1/w2 on v7x (MXU fp8 path) once accuracy is validated.

    attn_limit = _vmem_limit(_attn_resident_bytes(S, H, G, gdk), vmem_phys)
    ffn_limit = _vmem_limit(_ffn_resident_bytes(S, H, tf), vmem_phys)

    def run(single_buffer):
        cbuf = 1 if single_buffer else None                  # grid-invariant operands
        wbuf = 1 if (single_buffer and nF == 1) else None    # w1/w2 when untiled

        attn_kernel = functools.partial(_attn_kernel, heads_per_group=G, dk=dk)
        attn = pl.pallas_call(
            attn_kernel,
            out_shape=jax.ShapeDtypeStruct((B, S, H), x.dtype),
            grid_spec=pltpu.PrefetchScalarGridSpec(
                num_scalar_prefetch=0,
                grid=(B, nG),
                in_specs=[
                    _bspec((1, S, H), lambda b, hg: (b, 0, 0)),            # x
                    _bspec((1, G, S, S), lambda b, hg: (b, hg, 0, 0)),     # bias (bf16)
                    _bspec((1, H), lambda b, hg: (0, 0), cbuf),            # ln1 gamma
                    _bspec((1, H), lambda b, hg: (0, 0), cbuf),            # ln1 beta
                    _bspec((1, H, 3 * gdk), lambda b, hg: (hg, 0, 0)),     # fused QKV W
                    _bspec((1, 1, 3 * gdk), lambda b, hg: (hg, 0, 0)),     # fused QKV b
                    _bspec((1, gdk, H), lambda b, hg: (hg, 0, 0)),         # Wo rows
                    _bspec((1, H), lambda b, hg: (0, 0), cbuf),            # bo
                ],
                out_specs=pl.BlockSpec((1, S, H), lambda b, hg: (b, 0, 0)),
                scratch_shapes=[
                    pltpu.VMEM((S, H), jnp.bfloat16),          # LN1(x)
                    pltpu.VMEM((S, H), jnp.float32),           # attention accumulator
                    pltpu.VMEM((S, 3 * gdk), jnp.bfloat16),    # packed qkv (ref-sliced)
                    pltpu.VMEM((S, gdk), jnp.bfloat16),        # per-group contexts
                ],
            ),
            compiler_params=pltpu.CompilerParams(
                dimension_semantics=("parallel", "arbitrary"),
                vmem_limit_bytes=attn_limit,
            ),
        )
        x1 = attn(x, bias_bf16,
                  params["g1"], params["b1"],
                  wqkv, bqkv, wo, params["bo"])

        ffn = pl.pallas_call(
            _ffn_kernel,
            out_shape=jax.ShapeDtypeStruct((B, S, H), x.dtype),
            grid_spec=pltpu.PrefetchScalarGridSpec(
                num_scalar_prefetch=0,
                grid=(B, nF),
                in_specs=[
                    _bspec((1, S, H), lambda b, f: (b, 0, 0)),             # x1
                    _bspec((1, H), lambda b, f: (0, 0), cbuf),             # ln2 gamma
                    _bspec((1, H), lambda b, f: (0, 0), cbuf),             # ln2 beta
                    _bspec((H, tf), lambda b, f: (0, f), wbuf),            # w1 tile
                    _bspec((1, tf), lambda b, f: (0, f), wbuf),            # c1 tile
                    _bspec((tf, H), lambda b, f: (f, 0), wbuf),            # w2 tile
                    _bspec((1, H), lambda b, f: (0, 0), cbuf),             # c2
                ],
                out_specs=pl.BlockSpec((1, S, H), lambda b, f: (b, 0, 0)),
                scratch_shapes=[
                    pltpu.VMEM((S, H), jnp.bfloat16),    # LN2(x1)
                    pltpu.VMEM((S, H), jnp.float32),     # FFN accumulator
                ],
            ),
            compiler_params=pltpu.CompilerParams(
                dimension_semantics=("parallel", "arbitrary"),
                vmem_limit_bytes=ffn_limit,
            ),
        )
        return ffn(x1, params["g2"], params["b2"], w1, params["c1"], w2, params["c2"])

    try:
        return run(True)
    except Exception:
        # pipeline_mode / pl.Buffered(1) not supported on this jax build: fall back
        # to default double-buffering (correctness unchanged).
        return run(False)


# ----------------------------- pure-JAX reference -----------------------------

def _reference(x, attn_bias, params, num_heads):
    """Pure f32 reference mirroring the PyTorch module (eval mode)."""
    B, S, H = x.shape
    dk = H // num_heads
    scale = dk ** (-0.5)

    def ln(v, g, b):
        mu = jnp.mean(v, axis=-1, keepdims=True)
        var = jnp.mean((v - mu) ** 2, axis=-1, keepdims=True)
        return (v - mu) / jnp.sqrt(var + 1e-5) * g + b

    y = ln(x, params["g1"], params["b1"])
    q = y @ params["wq"] + params["bq"]
    k = y @ params["wk"] + params["bk"]
    v = y @ params["wv"] + params["bv"]
    q = q.reshape(B, S, num_heads, dk).transpose(0, 2, 1, 3) * scale
    k = k.reshape(B, S, num_heads, dk).transpose(0, 2, 1, 3)
    v = v.reshape(B, S, num_heads, dk).transpose(0, 2, 1, 3)
    s = jnp.einsum("bhqd,bhkd->bhqk", q, k) + attn_bias
    p = jax.nn.softmax(s, axis=-1)
    ctx = jnp.einsum("bhqk,bhkd->bhqd", p, v).transpose(0, 2, 1, 3).reshape(B, S, H)
    attn_out = ctx @ params["wo"] + params["bo"]
    x1 = x + attn_out
    y2 = ln(x1, params["g2"], params["b2"])
    hdn = y2 @ params["w1"] + params["c1"]
    hdn = 0.5 * hdn * (1.0 + jax.lax.erf(hdn / jnp.sqrt(2.0)))
    ffn_out = hdn @ params["w2"] + params["c2"]
    return x1 + ffn_out


if __name__ == "__main__":
    B, S, H, nH, F = 2, 8, 32, 4, 64

    key = jax.random.PRNGKey(0)
    ks = jax.random.split(key, 20)

    def w_init(k, fan_in, shape):
        bound = 1.0 / math.sqrt(fan_in)
        return jax.random.uniform(k, shape, jnp.float32, -bound, bound)

    params = {
        "g1": 1.0 + 0.1 * jax.random.normal(ks[14], (1, H), jnp.float32),
        "b1": 0.1 * jax.random.normal(ks[15], (1, H), jnp.float32),
        "wq": w_init(ks[0], H, (H, H)), "bq": w_init(ks[1], H, (1, H)),
        "wk": w_init(ks[2], H, (H, H)), "bk": w_init(ks[3], H, (1, H)),
        "wv": w_init(ks[4], H, (H, H)), "bv": w_init(ks[5], H, (1, H)),
        "wo": w_init(ks[6], H, (H, H)), "bo": w_init(ks[7], H, (1, H)),
        "g2": 1.0 + 0.1 * jax.random.normal(ks[16], (1, H), jnp.float32),
        "b2": 0.1 * jax.random.normal(ks[17], (1, H), jnp.float32),
        "w1": w_init(ks[8], H, (H, F)), "c1": w_init(ks[9], H, (1, F)),
        "w2": w_init(ks[10], F, (F, H)), "c2": w_init(ks[11], F, (1, H)),
    }

    x = jax.random.normal(ks[12], (B, S, H), jnp.float32)
    attn_bias = 0.1 * jax.random.normal(ks[13], (B, nH, S, S), jnp.float32)

    out = encoder_layer(x, attn_bias, params, nH)
    out = jax.block_until_ready(out)

    ref = _reference(x, attn_bias, params, nH)
    assert out.shape == (B, S, H)
    err = float(jnp.max(jnp.abs(out - ref)))
    # bf16 matmul operands / bf16 bias (f32 accumulation) -> loosened tolerance
    assert jnp.allclose(out, ref, atol=3e-2, rtol=3e-2), err

    print("KERNEL_OK")
</pallas_src>

<mosaic_0001>
module attributes {stable_mosaic.version = 11 : i64} {
  func.func @_attn_kernel(%arg0: i32, %arg1: i32, %arg2: memref<1x8x32xf32, #tpu.memory_space<vmem>>, %arg3: memref<1x4x8x8xbf16, #tpu.memory_space<vmem>>, %arg4: memref<1x32xf32, #tpu.memory_space<vmem>>, %arg5: memref<1x32xf32, #tpu.memory_space<vmem>>, %arg6: memref<1x32x96xbf16, #tpu.memory_space<vmem>>, %arg7: memref<1x1x96xf32, #tpu.memory_space<vmem>>, %arg8: memref<1x32x32xbf16, #tpu.memory_space<vmem>>, %arg9: memref<1x32xf32, #tpu.memory_space<vmem>>, %arg10: memref<1x8x32xf32, #tpu.memory_space<vmem>>, %arg11: memref<8x32xbf16, #tpu.memory_space<vmem>>, %arg12: memref<8x32xf32, #tpu.memory_space<vmem>>, %arg13: memref<8x96xbf16, #tpu.memory_space<vmem>>, %arg14: memref<8x32xbf16, #tpu.memory_space<vmem>>) attributes {dimension_semantics = [#tpu.dimension_semantics<parallel>, #tpu.dimension_semantics<arbitrary>], iteration_bounds = array<i64: 2, 1>, scalar_prefetch = 0 : i64, scratch_operands = 4 : i64, tpu.core_type = #tpu.core_type<tc>, window_params = [{transform_indices = @transform_0, window_bounds = array<i64: 1, 8, 32>}, {transform_indices = @transform_1, window_bounds = array<i64: 1, 4, 8, 8>}, {pipeline_mode = #tpu.pipeline_mode<synchronous>, transform_indices = @transform_2, window_bounds = array<i64: 1, 32>}, {pipeline_mode = #tpu.pipeline_mode<synchronous>, transform_indices = @transform_3, window_bounds = array<i64: 1, 32>}, {transform_indices = @transform_4, window_bounds = array<i64: 1, 32, 96>}, {transform_indices = @transform_5, window_bounds = array<i64: 1, 1, 96>}, {transform_indices = @transform_6, window_bounds = array<i64: 1, 32, 32>}, {pipeline_mode = #tpu.pipeline_mode<synchronous>, transform_indices = @transform_7, window_bounds = array<i64: 1, 32>}, {transform_indices = @transform_8, window_bounds = array<i64: 1, 8, 32>}]} {
    %c0_i32 = arith.constant 0 : i32
    %0 = arith.cmpi eq, %arg1, %c0_i32 : i32
    %1 = arith.extui %0 : i1 to i32
    %c0_i32_0 = arith.constant 0 : i32
    %2 = arith.cmpi ne, %1, %c0_i32_0 : i32
    scf.if %2 {
      %c0_76 = arith.constant 0 : index
      %c0_77 = arith.constant 0 : index
      %c0_78 = arith.constant 0 : index
      %123 = vector.load %arg2[%c0_76, %c0_77, %c0_78] : memref<1x8x32xf32, #tpu.memory_space<vmem>>, vector<1x8x32xf32>
      %124 = vector.shape_cast %123 : vector<1x8x32xf32> to vector<8x32xf32>
      %c0_79 = arith.constant 0 : index
      %c0_80 = arith.constant 0 : index
      %125 = vector.load %arg4[%c0_79, %c0_80] : memref<1x32xf32, #tpu.memory_space<vmem>>, vector<1x32xf32>
      %c0_81 = arith.constant 0 : index
      %c0_82 = arith.constant 0 : index
      %126 = vector.load %arg5[%c0_81, %c0_82] : memref<1x32xf32, #tpu.memory_space<vmem>>, vector<1x32xf32>
      %cst_83 = arith.constant dense<0.000000e+00> : vector<8xf32>
      %127 = vector.multi_reduction <add>, %124, %cst_83 [1] : vector<8x32xf32> to vector<8xf32>
      %128 = vector.shape_cast %127 : vector<8xf32> to vector<8x1xf32>
      %cst_84 = arith.constant 3.200000e+01 : f32
      %129 = vector.broadcast %cst_84 : f32 to vector<8x1xf32>
      %130 = arith.divf %128, %129 : vector<8x1xf32>
      %131 = vector.broadcast %130 : vector<8x1xf32> to vector<8x32xf32>
      %132 = arith.subf %124, %131 : vector<8x32xf32>
      %133 = arith.mulf %132, %132 : vector<8x32xf32>
      %cst_85 = arith.constant dense<0.000000e+00> : vector<8xf32>
      %134 = vector.multi_reduction <add>, %133, %cst_85 [1] : vector<8x32xf32> to vector<8xf32>
      %135 = vector.shape_cast %134 : vector<8xf32> to vector<8x1xf32>
      %cst_86 = arith.constant 3.200000e+01 : f32
      %136 = vector.broadcast %cst_86 : f32 to vector<8x1xf32>
      %137 = arith.divf %135, %136 : vector<8x1xf32>
      %138 = vector.broadcast %130 : vector<8x1xf32> to vector<8x32xf32>
      %139 = arith.subf %124, %138 : vector<8x32xf32>
      %cst_87 = arith.constant 9.99999974E-6 : f32
      %140 = vector.broadcast %cst_87 : f32 to vector<8x1xf32>
      %141 = arith.addf %137, %140 : vector<8x1xf32>
      %142 = math.rsqrt %141 : vector<8x1xf32>
      %143 = vector.broadcast %142 : vector<8x1xf32> to vector<8x32xf32>
      %144 = arith.mulf %139, %143 : vector<8x32xf32>
      %145 = vector.broadcast %125 : vector<1x32xf32> to vector<8x32xf32>
      %146 = arith.mulf %144, %145 : vector<8x32xf32>
      %147 = vector.broadcast %126 : vector<1x32xf32> to vector<8x32xf32>
      %148 = arith.addf %146, %147 : vector<8x32xf32>
      %149 = arith.truncf %148 : vector<8x32xf32> to vector<8x32xbf16>
      %c0_88 = arith.constant 0 : index
      %c0_89 = arith.constant 0 : index
      %150 = vector.load %arg11[%c0_88, %c0_89] : memref<8x32xbf16, #tpu.memory_space<vmem>>, vector<8x32xbf16>
      tpu.vector_store %arg11[%c0_88, %c0_89], %149 {strides = array<i32>} : memref<8x32xbf16, #tpu.memory_space<vmem>>, vector<8x32xbf16>,
      %cst_90 = arith.constant 0.000000e+00 : f32
      %151 = vector.broadcast %cst_90 : f32 to vector<8x32xf32>
      %c0_91 = arith.constant 0 : index
      %c0_92 = arith.constant 0 : index
      %152 = vector.load %arg12[%c0_91, %c0_92] : memref<8x32xf32, #tpu.memory_space<vmem>>, vector<8x32xf32>
      tpu.vector_store %arg12[%c0_91, %c0_92], %151 {strides = array<i32>} : memref<8x32xf32, #tpu.memory_space<vmem>>, vector<8x32xf32>,
    } else {
    }
    %c0 = arith.constant 0 : index
    %c0_1 = arith.constant 0 : index
    %3 = vector.load %arg11[%c0, %c0_1] : memref<8x32xbf16, #tpu.memory_space<vmem>>, vector<8x32xbf16>
    %c0_2 = arith.constant 0 : index
    %c0_3 = arith.constant 0 : index
    %c0_4 = arith.constant 0 : index
    %4 = vector.load %arg6[%c0_2, %c0_3, %c0_4] : memref<1x32x96xbf16, #tpu.memory_space<vmem>>, vector<1x32x96xbf16>
    %5 = vector.shape_cast %4 : vector<1x32x96xbf16> to vector<32x96xbf16>
    %cst = arith.constant dense<0.000000e+00> : vector<8x96xf32>
    %6 = tpu.matmul %3, %5, %cst {dimension_numbers = #tpu.dot_dimension_numbers<[1], [0], [0], [1], [0, 0, 1, 1], [], []>} : vector<8x32xbf16>, vector<32x96xbf16>, vector<8x96xf32> -> vector<8x96xf32>
    %c0_5 = arith.constant 0 : index
    %c0_6 = arith.constant 0 : index
    %c0_7 = arith.constant 0 : index
    %7 = vector.load %arg7[%c0_5, %c0_6, %c0_7] : memref<1x1x96xf32, #tpu.memory_space<vmem>>, vector<1x1x96xf32>
    %8 = vector.shape_cast %7 : vector<1x1x96xf32> to vector<1x96xf32>
    %9 = vector.broadcast %8 : vector<1x96xf32> to vector<8x96xf32>
    %10 = arith.addf %6, %9 : vector<8x96xf32>
    %11 = arith.truncf %10 : vector<8x96xf32> to vector<8x96xbf16>
    %c0_8 = arith.constant 0 : index
    %c0_9 = arith.constant 0 : index
    %12 = vector.load %arg13[%c0_8, %c0_9] : memref<8x96xbf16, #tpu.memory_space<vmem>>, vector<8x96xbf16>
    tpu.vector_store %arg13[%c0_8, %c0_9], %11 {strides = array<i32>} : memref<8x96xbf16, #tpu.memory_space<vmem>>, vector<8x96xbf16>,
    %c0_10 = arith.constant 0 : index
    %c0_11 = arith.constant 0 : index
    %13 = vector.load %arg13[%c0_10, %c0_11] : memref<8x96xbf16, #tpu.memory_space<vmem>>, vector<8x8xbf16>
    %c0_12 = arith.constant 0 : index
    %c32 = arith.constant 32 : index
    %14 = vector.load %arg13[%c0_12, %c32] : memref<8x96xbf16, #tpu.memory_space<vmem>>, vector<8x8xbf16>
    %c0_13 = arith.constant 0 : index
    %c64 = arith.constant 64 : index
    %15 = vector.load %arg13[%c0_13, %c64] : memref<8x96xbf16, #tpu.memory_space<vmem>>, vector<8x8xbf16>
    %16 = tpu.transpose %14, [1, 0] : vector<8x8xbf16> -> vector<8x8xbf16>
    %cst_14 = arith.constant dense<0.000000e+00> : vector<8x8xf32>
    %17 = tpu.matmul %13, %16, %cst_14 {dimension_numbers = #tpu.dot_dimension_numbers<[1], [0], [0], [1], [0, 0, 1, 1], [], []>} : vector<8x8xbf16>, vector<8x8xbf16>, vector<8x8xf32> -> vector<8x8xf32>
    %cst_15 = arith.constant 0.353553385 : f32
    %18 = vector.broadcast %cst_15 : f32 to vector<8x8xf32>
    %19 = arith.mulf %17, %18 : vector<8x8xf32>
    %c0_16 = arith.constant 0 : index
    %c0_17 = arith.constant 0 : index
    %c0_18 = arith.constant 0 : index
    %c0_19 = arith.constant 0 : index
    %20 = vector.load %arg3[%c0_16, %c0_17, %c0_18, %c0_19] : memref<1x4x8x8xbf16, #tpu.memory_space<vmem>>, vector<1x1x8x8xbf16>
    %21 = vector.shape_cast %20 : vector<1x1x8x8xbf16> to vector<8x8xbf16>
    %22 = arith.extf %21 : vector<8x8xbf16> to vector<8x8xf32>
    %23 = arith.addf %19, %22 : vector<8x8xf32>
    %cst_20 = arith.constant dense<0xFF800000> : vector<8xf32>
    %24 = vector.multi_reduction <maximumf>, %23, %cst_20 [1] : vector<8x8xf32> to vector<8xf32>
    %25 = vector.shape_cast %24 : vector<8xf32> to vector<8x1xf32>
    %26 = vector.broadcast %25 : vector<8x1xf32> to vector<8x8xf32>
    %27 = arith.subf %23, %26 : vector<8x8xf32>
    %28 = math.exp %27 : vector<8x8xf32>
    %cst_21 = arith.constant dense<0.000000e+00> : vector<8xf32>
    %29 = vector.multi_reduction <add>, %28, %cst_21 [1] : vector<8x8xf32> to vector<8xf32>
    %30 = vector.shape_cast %29 : vector<8xf32> to vector<8x1xf32>
    %31 = tpu.reciprocal %30 {approx = true} : vector<8x1xf32> -> vector<8x1xf32>
    %32 = vector.broadcast %31 : vector<8x1xf32> to vector<8x8xf32>
    %33 = arith.mulf %28, %32 : vector<8x8xf32>
    %34 = arith.truncf %33 : vector<8x8xf32> to vector<8x8xbf16>
    %cst_22 = arith.constant dense<0.000000e+00> : vector<8x8xf32>
    %35 = tpu.matmul %34, %15, %cst_22 {dimension_numbers = #tpu.dot_dimension_numbers<[1], [0], [0], [1], [0, 0, 1, 1], [], []>} : vector<8x8xbf16>, vector<8x8xbf16>, vector<8x8xf32> -> vector<8x8xf32>
    %36 = arith.truncf %35 : vector<8x8xf32> to vector<8x8xbf16>
    %c0_23 = arith.constant 0 : index
    %c0_24 = arith.constant 0 : index
    %37 = vector.load %arg14[%c0_23, %c0_24] : memref<8x32xbf16, #tpu.memory_space<vmem>>, vector<8x8xbf16>
    tpu.vector_store %arg14[%c0_23, %c0_24], %36 {strides = array<i32>} : memref<8x32xbf16, #tpu.memory_space<vmem>>, vector<8x8xbf16>,
    %c0_25 = arith.constant 0 : index
    %c8 = arith.constant 8 : index
    %38 = vector.load %arg13[%c0_25, %c8] : memref<8x96xbf16, #tpu.memory_space<vmem>>, vector<8x8xbf16>
    %c0_26 = arith.constant 0 : index
    %c40 = arith.constant 40 : index
    %39 = vector.load %arg13[%c0_26, %c40] : memref<8x96xbf16, #tpu.memory_space<vmem>>, vector<8x8xbf16>
    %c0_27 = arith.constant 0 : index
    %c72 = arith.constant 72 : index
    %40 = vector.load %arg13[%c0_27, %c72] : memref<8x96xbf16, #tpu.memory_space<vmem>>, vector<8x8xbf16>
    %41 = tpu.transpose %39, [1, 0] : vector<8x8xbf16> -> vector<8x8xbf16>
    %cst_28 = arith.constant dense<0.000000e+00> : vector<8x8xf32>
    %42 = tpu.matmul %38, %41, %cst_28 {dimension_numbers = #tpu.dot_dimension_numbers<[1], [0], [0], [1], [0, 0, 1, 1], [], []>} : vector<8x8xbf16>, vector<8x8xbf16>, vector<8x8xf32> -> vector<8x8xf32>
    %cst_29 = arith.constant 0.353553385 : f32
    %43 = vector.broadcast %cst_29 : f32 to vector<8x8xf32>
    %44 = arith.mulf %42, %43 : vector<8x8xf32>
    %c0_30 = arith.constant 0 : index
    %c1 = arith.constant 1 : index
    %c0_31 = arith.constant 0 : index
    %c0_32 = arith.constant 0 : index
    %45 = vector.load %arg3[%c0_30, %c1, %c0_31, %c0_32] : memref<1x4x8x8xbf16, #tpu.memory_space<vmem>>, vector<1x1x8x8xbf16>
    %46 = vector.shape_cast %45 : vector<1x1x8x8xbf16> to vector<8x8xbf16>
    %47 = arith.extf %46 : vector<8x8xbf16> to vector<8x8xf32>
    %48 = arith.addf %44, %47 : vector<8x8xf32>
    %cst_33 = arith.constant dense<0xFF800000> : vector<8xf32>
    %49 = vector.multi_reduction <maximumf>, %48, %cst_33 [1] : vector<8x8xf32> to vector<8xf32>
    %50 = vector.shape_cast %49 : vector<8xf32> to vector<8x1xf32>
    %51 = vector.broadcast %50 : vector<8x1xf32> to vector<8x8xf32>
    %52 = arith.subf %48, %51 : vector<8x8xf32>
    %53 = math.exp %52 : vector<8x8xf32>
    %cst_34 = arith.constant dense<0.000000e+00> : vector<8xf32>
    %54 = vector.multi_reduction <add>, %53, %cst_34 [1] : vector<8x8xf32> to vector<8xf32>
    %55 = vector.shape_cast %54 : vector<8xf32> to vector<8x1xf32>
    %56 = tpu.reciprocal %55 {approx = true} : vector<8x1xf32> -> vector<8x1xf32>
    %57 = vector.broadcast %56 : vector<8x1xf32> to vector<8x8xf32>
    %58 = arith.mulf %53, %57 : vector<8x8xf32>
    %59 = arith.truncf %58 : vector<8x8xf32> to vector<8x8xbf16>
    %cst_35 = arith.constant dense<0.000000e+00> : vector<8x8xf32>
    %60 = tpu.matmul %59, %40, %cst_35 {dimension_numbers = #tpu.dot_dimension_numbers<[1], [0], [0], [1], [0, 0, 1, 1], [], []>} : vector<8x8xbf16>, vector<8x8xbf16>, vector<8x8xf32> -> vector<8x8xf32>
    %61 = arith.truncf %60 : vector<8x8xf32> to vector<8x8xbf16>
    %c0_36 = arith.constant 0 : index
    %c8_37 = arith.constant 8 : index
    %62 = vector.load %arg14[%c0_36, %c8_37] : memref<8x32xbf16, #tpu.memory_space<vmem>>, vector<8x8xbf16>
    tpu.vector_store %arg14[%c0_36, %c8_37], %61 {strides = array<i32>} : memref<8x32xbf16, #tpu.memory_space<vmem>>, vector<8x8xbf16>,
    %c0_38 = arith.constant 0 : index
    %c16 = arith.constant 16 : index
    %63 = vector.load %arg13[%c0_38, %c16] : memref<8x96xbf16, #tpu.memory_space<vmem>>, vector<8x8xbf16>
    %c0_39 = arith.constant 0 : index
    %c48 = arith.constant 48 : index
    %64 = vector.load %arg13[%c0_39, %c48] : memref<8x96xbf16, #tpu.memory_space<vmem>>, vector<8x8xbf16>
    %c0_40 = arith.constant 0 : index
    %c80 = arith.constant 80 : index
    %65 = vector.load %arg13[%c0_40, %c80] : memref<8x96xbf16, #tpu.memory_space<vmem>>, vector<8x8xbf16>
    %66 = tpu.transpose %64, [1, 0] : vector<8x8xbf16> -> vector<8x8xbf16>
    %cst_41 = arith.constant dense<0.000000e+00> : vector<8x8xf32>
    %67 = tpu.matmul %63, %66, %cst_41 {dimension_numbers = #tpu.dot_dimension_numbers<[1], [0], [0], [1], [0, 0, 1, 1], [], []>} : vector<8x8xbf16>, vector<8x8xbf16>, vector<8x8xf32> -> vector<8x8xf32>
    %cst_42 = arith.constant 0.353553385 : f32
    %68 = vector.broadcast %cst_42 : f32 to vector<8x8xf32>
    %69 = arith.mulf %67, %68 : vector<8x8xf32>
    %c0_43 = arith.constant 0 : index
    %c2 = arith.constant 2 : index
    %c0_44 = arith.constant 0 : index
    %c0_45 = arith.constant 0 : index
    %70 = vector.load %arg3[%c0_43, %c2, %c0_44, %c0_45] : memref<1x4x8x8xbf16, #tpu.memory_space<vmem>>, vector<1x1x8x8xbf16>
    %71 = vector.shape_cast %70 : vector<1x1x8x8xbf16> to vector<8x8xbf16>
    %72 = arith.extf %71 : vector<8x8xbf16> to vector<8x8xf32>
    %73 = arith.addf %69, %72 : vector<8x8xf32>
    %cst_46 = arith.constant dense<0xFF800000> : vector<8xf32>
    %74 = vector.multi_reduction <maximumf>, %73, %cst_46 [1] : vector<8x8xf32> to vector<8xf32>
    %75 = vector.shape_cast %74 : vector<8xf32> to vector<8x1xf32>
    %76 = vector.broadcast %75 : vector<8x1xf32> to vector<8x8xf32>
    %77 = arith.subf %73, %76 : vector<8x8xf32>
    %78 = math.exp %77 : vector<8x8xf32>
    %cst_47 = arith.constant dense<0.000000e+00> : vector<8xf32>
    %79 = vector.multi_reduction <add>, %78, %cst_47 [1] : vector<8x8xf32> to vector<8xf32>
    %80 = vector.shape_cast %79 : vector<8xf32> to vector<8x1xf32>
    %81 = tpu.reciprocal %80 {approx = true} : vector<8x1xf32> -> vector<8x1xf32>
    %82 = vector.broadcast %81 : vector<8x1xf32> to vector<8x8xf32>
    %83 = arith.mulf %78, %82 : vector<8x8xf32>
    %84 = arith.truncf %83 : vector<8x8xf32> to vector<8x8xbf16>
    %cst_48 = arith.constant dense<0.000000e+00> : vector<8x8xf32>
    %85 = tpu.matmul %84, %65, %cst_48 {dimension_numbers = #tpu.dot_dimension_numbers<[1], [0], [0], [1], [0, 0, 1, 1], [], []>} : vector<8x8xbf16>, vector<8x8xbf16>, vector<8x8xf32> -> vector<8x8xf32>
    %86 = arith.truncf %85 : vector<8x8xf32> to vector<8x8xbf16>
    %c0_49 = arith.constant 0 : index
    %c16_50 = arith.constant 16 : index
    %87 = vector.load %arg14[%c0_49, %c16_50] : memref<8x32xbf16, #tpu.memory_space<vmem>>, vector<8x8xbf16>
    tpu.vector_store %arg14[%c0_49, %c16_50], %86 {strides = array<i32>} : memref<8x32xbf16, #tpu.memory_space<vmem>>, vector<8x8xbf16>,
    %c0_51 = arith.constant 0 : index
    %c24 = arith.constant 24 : index
    %88 = vector.load %arg13[%c0_51, %c24] : memref<8x96xbf16, #tpu.memory_space<vmem>>, vector<8x8xbf16>
    %c0_52 = arith.constant 0 : index
    %c56 = arith.constant 56 : index
    %89 = vector.load %arg13[%c0_52, %c56] : memref<8x96xbf16, #tpu.memory_space<vmem>>, vector<8x8xbf16>
    %c0_53 = arith.constant 0 : index
    %c88 = arith.constant 88 : index
    %90 = vector.load %arg13[%c0_53, %c88] : memref<8x96xbf16, #tpu.memory_space<vmem>>, vector<8x8xbf16>
    %91 = tpu.transpose %89, [1, 0] : vector<8x8xbf16> -> vector<8x8xbf16>
    %cst_54 = arith.constant dense<0.000000e+00> : vector<8x8xf32>
    %92 = tpu.matmul %88, %91, %cst_54 {dimension_numbers = #tpu.dot_dimension_numbers<[1], [0], [0], [1], [0, 0, 1, 1], [], []>} : vector<8x8xbf16>, vector<8x8xbf16>, vector<8x8xf32> -> vector<8x8xf32>
    %cst_55 = arith.constant 0.353553385 : f32
    %93 = vector.broadcast %cst_55 : f32 to vector<8x8xf32>
    %94 = arith.mulf %92, %93 : vector<8x8xf32>
    %c0_56 = arith.constant 0 : index
    %c3 = arith.constant 3 : index
    %c0_57 = arith.constant 0 : index
    %c0_58 = arith.constant 0 : index
    %95 = vector.load %arg3[%c0_56, %c3, %c0_57, %c0_58] : memref<1x4x8x8xbf16, #tpu.memory_space<vmem>>, vector<1x1x8x8xbf16>
    %96 = vector.shape_cast %95 : vector<1x1x8x8xbf16> to vector<8x8xbf16>
    %97 = arith.extf %96 : vector<8x8xbf16> to vector<8x8xf32>
    %98 = arith.addf %94, %97 : vector<8x8xf32>
    %cst_59 = arith.constant dense<0xFF800000> : vector<8xf32>
    %99 = vector.multi_reduction <maximumf>, %98, %cst_59 [1] : vector<8x8xf32> to vector<8xf32>
    %100 = vector.shape_cast %99 : vector<8xf32> to vector<8x1xf32>
    %101 = vector.broadcast %100 : vector<8x1xf32> to vector<8x8xf32>
    %102 = arith.subf %98, %101 : vector<8x8xf32>
    %103 = math.exp %102 : vector<8x8xf32>
    %cst_60 = arith.constant dense<0.000000e+00> : vector<8xf32>
    %104 = vector.multi_reduction <add>, %103, %cst_60 [1] : vector<8x8xf32> to vector<8xf32>
    %105 = vector.shape_cast %104 : vector<8xf32> to vector<8x1xf32>
    %106 = tpu.reciprocal %105 {approx = true} : vector<8x1xf32> -> vector<8x1xf32>
    %107 = vector.broadcast %106 : vector<8x1xf32> to vector<8x8xf32>
    %108 = arith.mulf %103, %107 : vector<8x8xf32>
    %109 = arith.truncf %108 : vector<8x8xf32> to vector<8x8xbf16>
    %cst_61 = arith.constant dense<0.000000e+00> : vector<8x8xf32>
    %110 = tpu.matmul %109, %90, %cst_61 {dimension_numbers = #tpu.dot_dimension_numbers<[1], [0], [0], [1], [0, 0, 1, 1], [], []>} : vector<8x8xbf16>, vector<8x8xbf16>, vector<8x8xf32> -> vector<8x8xf32>
    %111 = arith.truncf %110 : vector<8x8xf32> to vector<8x8xbf16>
    %c0_62 = arith.constant 0 : index
    %c24_63 = arith.constant 24 : index
    %112 = vector.load %arg14[%c0_62, %c24_63] : memref<8x32xbf16, #tpu.memory_space<vmem>>, vector<8x8xbf16>
    tpu.vector_store %arg14[%c0_62, %c24_63], %111 {strides = array<i32>} : memref<8x32xbf16, #tpu.memory_space<vmem>>, vector<8x8xbf16>,
    %c0_64 = arith.constant 0 : index
    %c0_65 = arith.constant 0 : index
    %113 = vector.load %arg12[%c0_64, %c0_65] : memref<8x32xf32, #tpu.memory_space<vmem>>, vector<8x32xf32>
    %c0_66 = arith.constant 0 : index
    %c0_67 = arith.constant 0 : index
    %114 = vector.load %arg14[%c0_66, %c0_67] : memref<8x32xbf16, #tpu.memory_space<vmem>>, vector<8x32xbf16>
    %c0_68 = arith.constant 0 : index
    %c0_69 = arith.constant 0 : index
    %c0_70 = arith.constant 0 : index
    %115 = vector.load %arg8[%c0_68, %c0_69, %c0_70] : memref<1x32x32xbf16, #tpu.memory_space<vmem>>, vector<1x32x32xbf16>
    %116 = vector.shape_cast %115 : vector<1x32x32xbf16> to vector<32x32xbf16>
    %cst_71 = arith.constant dense<0.000000e+00> : vector<8x32xf32>
    %117 = tpu.matmul %114, %116, %cst_71 {dimension_numbers = #tpu.dot_dimension_numbers<[1], [0], [0], [1], [0, 0, 1, 1], [], []>} : vector<8x32xbf16>, vector<32x32xbf16>, vector<8x32xf32> -> vector<8x32xf32>
    %118 = arith.addf %113, %117 : vector<8x32xf32>
    %c0_72 = arith.constant 0 : index
    %c0_73 = arith.constant 0 : index
    %119 = vector.load %arg12[%c0_72, %c0_73] : memref<8x32xf32, #tpu.memory_space<vmem>>, vector<8x32xf32>
    tpu.vector_store %arg12[%c0_72, %c0_73], %118 {strides = array<i32>} : memref<8x32xf32, #tpu.memory_space<vmem>>, vector<8x32xf32>,
    %c0_i32_74 = arith.constant 0 : i32
    %120 = arith.cmpi eq, %arg1, %c0_i32_74 : i32
    %121 = arith.extui %120 : i1 to i32
    %c0_i32_75 = arith.constant 0 : i32
    %122 = arith.cmpi ne, %121, %c0_i32_75 : i32
    scf.if %122 {
      %c0_76 = arith.constant 0 : index
      %c0_77 = arith.constant 0 : index
      %c0_78 = arith.constant 0 : index
      %123 = vector.load %arg2[%c0_76, %c0_77, %c0_78] : memref<1x8x32xf32, #tpu.memory_space<vmem>>, vector<1x8x32xf32>
      %124 = vector.shape_cast %123 : vector<1x8x32xf32> to vector<8x32xf32>
      %c0_79 = arith.constant 0 : index
      %c0_80 = arith.constant 0 : index
      %125 = vector.load %arg12[%c0_79, %c0_80] : memref<8x32xf32, #tpu.memory_space<vmem>>, vector<8x32xf32>
      %126 = arith.addf %124, %125 : vector<8x32xf32>
      %c0_81 = arith.constant 0 : index
      %c0_82 = arith.constant 0 : index
      %127 = vector.load %arg9[%c0_81, %c0_82] : memref<1x32xf32, #tpu.memory_space<vmem>>, vector<1x32xf32>
      %128 = vector.broadcast %127 : vector<1x32xf32> to vector<8x32xf32>
      %129 = arith.addf %126, %128 : vector<8x32xf32>
      %c0_83 = arith.constant 0 : index
      %c0_84 = arith.constant 0 : index
      %c0_85 = arith.constant 0 : index
      %130 = vector.load %arg10[%c0_83, %c0_84, %c0_85] : memref<1x8x32xf32, #tpu.memory_space<vmem>>, vector<1x8x32xf32>
      %131 = vector.shape_cast %130 : vector<1x8x32xf32> to vector<8x32xf32>
      %132 = vector.shape_cast %129 : vector<8x32xf32> to vector<1x8x32xf32>
      tpu.vector_store %arg10[%c0_83, %c0_84, %c0_85], %132 {strides = array<i32>} : memref<1x8x32xf32, #tpu.memory_space<vmem>>, vector<1x8x32xf32>,
    } else {
    }
    return
  }
  func.func @transform_0(%arg0: i32, %arg1: i32) -> (i32, i32, i32) {
    %c0_i32 = arith.constant 0 : i32
    %c0_i32_0 = arith.constant 0 : i32
    %c0_i32_1 = arith.constant 0 : i32
    return %arg0, %c0_i32, %c0_i32_0 : i32, i32, i32
  }
  func.func @transform_1(%arg0: i32, %arg1: i32) -> (i32, i32, i32, i32) {
    %c0_i32 = arith.constant 0 : i32
    %c0_i32_0 = arith.constant 0 : i32
    %c0_i32_1 = arith.constant 0 : i32
    return %arg0, %arg1, %c0_i32, %c0_i32_0 : i32, i32, i32, i32
  }
  func.func @transform_2(%arg0: i32, %arg1: i32) -> (i32, i32) {
    %c0_i32 = arith.constant 0 : i32
    %c0_i32_0 = arith.constant 0 : i32
    %c0_i32_1 = arith.constant 0 : i32
    return %c0_i32, %c0_i32_0 : i32, i32
  }
  func.func @transform_3(%arg0: i32, %arg1: i32) -> (i32, i32) {
    %c0_i32 = arith.constant 0 : i32
    %c0_i32_0 = arith.constant 0 : i32
    %c0_i32_1 = arith.constant 0 : i32
    return %c0_i32, %c0_i32_0 : i32, i32
  }
  func.func @transform_4(%arg0: i32, %arg1: i32) -> (i32, i32, i32) {
    %c0_i32 = arith.constant 0 : i32
    %c0_i32_0 = arith.constant 0 : i32
    %c0_i32_1 = arith.constant 0 : i32
    return %arg1, %c0_i32, %c0_i32_0 : i32, i32, i32
  }
  func.func @transform_5(%arg0: i32, %arg1: i32) -> (i32, i32, i32) {
    %c0_i32 = arith.constant 0 : i32
    %c0_i32_0 = arith.constant 0 : i32
    %c0_i32_1 = arith.constant 0 : i32
    return %arg1, %c0_i32, %c0_i32_0 : i32, i32, i32
  }
  func.func @transform_6(%arg0: i32, %arg1: i32) -> (i32, i32, i32) {
    %c0_i32 = arith.constant 0 : i32
    %c0_i32_0 = arith.constant 0 : i32
    %c0_i32_1 = arith.constant 0 : i32
    return %arg1, %c0_i32, %c0_i32_0 : i32, i32, i32
  }
  func.func @transform_7(%arg0: i32, %arg1: i32) -> (i32, i32) {
    %c0_i32 = arith.constant 0 : i32
    %c0_i32_0 = arith.constant 0 : i32
    %c0_i32_1 = arith.constant 0 : i32
    return %c0_i32, %c0_i32_0 : i32, i32
  }
  func.func @transform_8(%arg0: i32, %arg1: i32) -> (i32, i32, i32) {
    %c0_i32 = arith.constant 0 : i32
    %c0_i32_0 = arith.constant 0 : i32
    %c0_i32_1 = arith.constant 0 : i32
    return %arg0, %c0_i32, %c0_i32_0 : i32, i32, i32
  }
}

module attributes {stable_mosaic.version = 11 : i64} {
  func.func @_attn_kernel(%arg0: i32, %arg1: i32, %arg2: memref<1x8x32xf32, #tpu.memory_space<vmem>>, %arg3: memref<1x4x8x8xbf16, #tpu.memory_space<vmem>>, %arg4: memref<1x32xf32, #tpu.memory_space<vmem>>, %arg5: memref<1x32xf32, #tpu.memory_space<vmem>>, %arg6: memref<1x32x96xbf16, #tpu.memory_space<vmem>>, %arg7: memref<1x1x96xf32, #tpu.memory_space<vmem>>, %arg8: memref<1x32x32xbf16, #tpu.memory_space<vmem>>, %arg9: memref<1x32xf32, #tpu.memory_space<vmem>>, %arg10: memref<1x8x32xf32, #tpu.memory_space<vmem>>, %arg11: memref<8x32xbf16, #tpu.memory_space<vmem>>, %arg12: memref<8x32xf32, #tpu.memory_space<vmem>>, %arg13: memref<8x96xbf16, #tpu.memory_space<vmem>>, %arg14: memref<8x32xbf16, #tpu.memory_space<vmem>>) attributes {dimension_semantics = [#tpu.dimension_semantics<parallel>, #tpu.dimension_semantics<arbitrary>], iteration_bounds = array<i64: 2, 1>, scalar_prefetch = 0 : i64, scratch_operands = 4 : i64, tpu.core_type = #tpu.core_type<tc>, window_params = [{transform_indices = @transform_0, window_bounds = array<i64: 1, 8, 32>}, {transform_indices = @transform_1, window_bounds = array<i64: 1, 4, 8, 8>}, {pipeline_mode = #tpu.pipeline_mode<synchronous>, transform_indices = @transform_2, window_bounds = array<i64: 1, 32>}, {pipeline_mode = #tpu.pipeline_mode<synchronous>, transform_indices = @transform_3, window_bounds = array<i64: 1, 32>}, {transform_indices = @transform_4, window_bounds = array<i64: 1, 32, 96>}, {transform_indices = @transform_5, window_bounds = array<i64: 1, 1, 96>}, {transform_indices = @transform_6, window_bounds = array<i64: 1, 32, 32>}, {pipeline_mode = #tpu.pipeline_mode<synchronous>, transform_indices = @transform_7, window_bounds = array<i64: 1, 32>}, {transform_indices = @transform_8, window_bounds = array<i64: 1, 8, 32>}]} {
    %c0_i32 = arith.constant 0 : i32
    %0 = arith.cmpi eq, %arg1, %c0_i32 : i32
    %1 = arith.extui %0 : i1 to i32
    %c0_i32_0 = arith.constant 0 : i32
    %2 = arith.cmpi ne, %1, %c0_i32_0 : i32
    scf.if %2 {
      %c0_76 = arith.constant 0 : index
      %c0_77 = arith.constant 0 : index
      %c0_78 = arith.constant 0 : index
      %123 = vector.load %arg2[%c0_76, %c0_77, %c0_78] : memref<1x8x32xf32, #tpu.memory_space<vmem>>, vector<1x8x32xf32>
      %124 = vector.shape_cast %123 : vector<1x8x32xf32> to vector<8x32xf32>
      %c0_79 = arith.constant 0 : index
      %c0_80 = arith.constant 0 : index
      %125 = vector.load %arg4[%c0_79, %c0_80] : memref<1x32xf32, #tpu.memory_space<vmem>>, vector<1x32xf32>
      %c0_81 = arith.constant 0 : index
      %c0_82 = arith.constant 0 : index
      %126 = vector.load %arg5[%c0_81, %c0_82] : memref<1x32xf32, #tpu.memory_space<vmem>>, vector<1x32xf32>
      %cst_83 = arith.constant dense<0.000000e+00> : vector<8xf32>
      %127 = vector.multi_reduction <add>, %124, %cst_83 [1] : vector<8x32xf32> to vector<8xf32>
      %128 = vector.shape_cast %127 : vector<8xf32> to vector<8x1xf32>
      %cst_84 = arith.constant 3.200000e+01 : f32
      %129 = vector.broadcast %cst_84 : f32 to vector<8x1xf32>
      %130 = arith.divf %128, %129 : vector<8x1xf32>
      %131 = vector.broadcast %130 : vector<8x1xf32> to vector<8x32xf32>
      %132 = arith.subf %124, %131 : vector<8x32xf32>
      %133 = arith.mulf %132, %132 : vector<8x32xf32>
      %cst_85 = arith.constant dense<0.000000e+00> : vector<8xf32>
      %134 = vector.multi_reduction <add>, %133, %cst_85 [1] : vector<8x32xf32> to vector<8xf32>
      %135 = vector.shape_cast %134 : vector<8xf32> to vector<8x1xf32>
      %cst_86 = arith.constant 3.200000e+01 : f32
      %136 = vector.broadcast %cst_86 : f32 to vector<8x1xf32>
      %137 = arith.divf %135, %136 : vector<8x1xf32>
      %138 = vector.broadcast %130 : vector<8x1xf32> to vector<8x32xf32>
      %139 = arith.subf %124, %138 : vector<8x32xf32>
      %cst_87 = arith.constant 9.99999974E-6 : f32
      %140 = vector.broadcast %cst_87 : f32 to vector<8x1xf32>
      %141 = arith.addf %137, %140 : vector<8x1xf32>
      %142 = math.rsqrt %141 : vector<8x1xf32>
      %143 = vector.broadcast %142 : vector<8x1xf32> to vector<8x32xf32>
      %144 = arith.mulf %139, %143 : vector<8x32xf32>
      %145 = vector.broadcast %125 : vector<1x32xf32> to vector<8x32xf32>
      %146 = arith.mulf %144, %145 : vector<8x32xf32>
      %147 = vector.broadcast %126 : vector<1x32xf32> to vector<8x32xf32>
      %148 = arith.addf %146, %147 : vector<8x32xf32>
      %149 = arith.truncf %148 : vector<8x32xf32> to vector<8x32xbf16>
      %c0_88 = arith.constant 0 : index
      %c0_89 = arith.constant 0 : index
      %150 = vector.load %arg11[%c0_88, %c0_89] : memref<8x32xbf16, #tpu.memory_space<vmem>>, vector<8x32xbf16>
      tpu.vector_store %arg11[%c0_88, %c0_89], %149 {strides = array<i32>} : memref<8x32xbf16, #tpu.memory_space<vmem>>, vector<8x32xbf16>,
      %cst_90 = arith.constant 0.000000e+00 : f32
      %151 = vector.broadcast %cst_90 : f32 to vector<8x32xf32>
      %c0_91 = arith.constant 0 : index
      %c0_92 = arith.constant 0 : index
      %152 = vector.load %arg12[%c0_91, %c0_92] : memref<8x32xf32, #tpu.memory_space<vmem>>, vector<8x32xf32>
      tpu.vector_store %arg12[%c0_91, %c0_92], %151 {strides = array<i32>} : memref<8x32xf32, #tpu.memory_space<vmem>>, vector<8x32xf32>,
    } else {
    }
    %c0 = arith.constant 0 : index
    %c0_1 = arith.constant 0 : index
    %3 = vector.load %arg11[%c0, %c0_1] : memref<8x32xbf16, #tpu.memory_space<vmem>>, vector<8x32xbf16>
    %c0_2 = arith.constant 0 : index
    %c0_3 = arith.constant 0 : index
    %c0_4 = arith.constant 0 : index
    %4 = vector.load %arg6[%c0_2, %c0_3, %c0_4] : memref<1x32x96xbf16, #tpu.memory_space<vmem>>, vector<1x32x96xbf16>
    %5 = vector.shape_cast %4 : vector<1x32x96xbf16> to vector<32x96xbf16>
    %cst = arith.constant dense<0.000000e+00> : vector<8x96xf32>
    %6 = tpu.matmul %3, %5, %cst {dimension_numbers = #tpu.dot_dimension_numbers<[1], [0], [0], [1], [0, 0, 1, 1], [], []>} : vector<8x32xbf16>, vector<32x96xbf16>, vector<8x96xf32> -> vector<8x96xf32>
    %c0_5 = arith.constant 0 : index
    %c0_6 = arith.constant 0 : index
    %c0_7 = arith.constant 0 : index
    %7 = vector.load %arg7[%c0_5, %c0_6, %c0_7] : memref<1x1x96xf32, #tpu.memory_space<vmem>>, vector<1x1x96xf32>
    %8 = vector.shape_cast %7 : vector<1x1x96xf32> to vector<1x96xf32>
    %9 = vector.broadcast %8 : vector<1x96xf32> to vector<8x96xf32>
    %10 = arith.addf %6, %9 : vector<8x96xf32>
    %11 = arith.truncf %10 : vector<8x96xf32> to vector<8x96xbf16>
    %c0_8 = arith.constant 0 : index
    %c0_9 = arith.constant 0 : index
    %12 = vector.load %arg13[%c0_8, %c0_9] : memref<8x96xbf16, #tpu.memory_space<vmem>>, vector<8x96xbf16>
    tpu.vector_store %arg13[%c0_8, %c0_9], %11 {strides = array<i32>} : memref<8x96xbf16, #tpu.memory_space<vmem>>, vector<8x96xbf16>,
    %c0_10 = arith.constant 0 : index
    %c0_11 = arith.constant 0 : index
    %13 = vector.load %arg13[%c0_10, %c0_11] : memref<8x96xbf16, #tpu.memory_space<vmem>>, vector<8x8xbf16>
    %c0_12 = arith.constant 0 : index
    %c32 = arith.constant 32 : index
    %14 = vector.load %arg13[%c0_12, %c32] : memref<8x96xbf16, #tpu.memory_space<vmem>>, vector<8x8xbf16>
    %c0_13 = arith.constant 0 : index
    %c64 = arith.constant 64 : index
    %15 = vector.load %arg13[%c0_13, %c64] : memref<8x96xbf16, #tpu.memory_space<vmem>>, vector<8x8xbf16>
    %16 = tpu.transpose %14, [1, 0] : vector<8x8xbf16> -> vector<8x8xbf16>
    %cst_14 = arith.constant dense<0.000000e+00> : vector<8x8xf32>
    %17 = tpu.matmul %13, %16, %cst_14 {dimension_numbers = #tpu.dot_dimension_numbers<[1], [0], [0], [1], [0, 0, 1, 1], [], []>} : vector<8x8xbf16>, vector<8x8xbf16>, vector<8x8xf32> -> vector<8x8xf32>
    %cst_15 = arith.constant 0.353553385 : f32
    %18 = vector.broadcast %cst_15 : f32 to vector<8x8xf32>
    %19 = arith.mulf %17, %18 : vector<8x8xf32>
    %c0_16 = arith.constant 0 : index
    %c0_17 = arith.constant 0 : index
    %c0_18 = arith.constant 0 : index
    %c0_19 = arith.constant 0 : index
    %20 = vector.load %arg3[%c0_16, %c0_17, %c0_18, %c0_19] : memref<1x4x8x8xbf16, #tpu.memory_space<vmem>>, vector<1x1x8x8xbf16>
    %21 = vector.shape_cast %20 : vector<1x1x8x8xbf16> to vector<8x8xbf16>
    %22 = arith.extf %21 : vector<8x8xbf16> to vector<8x8xf32>
    %23 = arith.addf %19, %22 : vector<8x8xf32>
    %cst_20 = arith.constant dense<0xFF800000> : vector<8xf32>
    %24 = vector.multi_reduction <maximumf>, %23, %cst_20 [1] : vector<8x8xf32> to vector<8xf32>
    %25 = vector.shape_cast %24 : vector<8xf32> to vector<8x1xf32>
    %26 = vector.broadcast %25 : vector<8x1xf32> to vector<8x8xf32>
    %27 = arith.subf %23, %26 : vector<8x8xf32>
    %28 = math.exp %27 : vector<8x8xf32>
    %cst_21 = arith.constant dense<0.000000e+00> : vector<8xf32>
    %29 = vector.multi_reduction <add>, %28, %cst_21 [1] : vector<8x8xf32> to vector<8xf32>
    %30 = vector.shape_cast %29 : vector<8xf32> to vector<8x1xf32>
    %31 = tpu.reciprocal %30 {approx = true} : vector<8x1xf32> -> vector<8x1xf32>
    %32 = vector.broadcast %31 : vector<8x1xf32> to vector<8x8xf32>
    %33 = arith.mulf %28, %32 : vector<8x8xf32>
    %34 = arith.truncf %33 : vector<8x8xf32> to vector<8x8xbf16>
    %cst_22 = arith.constant dense<0.000000e+00> : vector<8x8xf32>
    %35 = tpu.matmul %34, %15, %cst_22 {dimension_numbers = #tpu.dot_dimension_numbers<[1], [0], [0], [1], [0, 0, 1, 1], [], []>} : vector<8x8xbf16>, vector<8x8xbf16>, vector<8x8xf32> -> vector<8x8xf32>
    %36 = arith.truncf %35 : vector<8x8xf32> to vector<8x8xbf16>
    %c0_23 = arith.constant 0 : index
    %c0_24 = arith.constant 0 : index
    %37 = vector.load %arg14[%c0_23, %c0_24] : memref<8x32xbf16, #tpu.memory_space<vmem>>, vector<8x8xbf16>
    tpu.vector_store %arg14[%c0_23, %c0_24], %36 {strides = array<i32>} : memref<8x32xbf16, #tpu.memory_space<vmem>>, vector<8x8xbf16>,
    %c0_25 = arith.constant 0 : index
    %c8 = arith.constant 8 : index
    %38 = vector.load %arg13[%c0_25, %c8] : memref<8x96xbf16, #tpu.memory_space<vmem>>, vector<8x8xbf16>
    %c0_26 = arith.constant 0 : index
    %c40 = arith.constant 40 : index
    %39 = vector.load %arg13[%c0_26, %c40] : memref<8x96xbf16, #tpu.memory_space<vmem>>, vector<8x8xbf16>
    %c0_27 = arith.constant 0 : index
    %c72 = arith.constant 72 : index
    %40 = vector.load %arg13[%c0_27, %c72] : memref<8x96xbf16, #tpu.memory_space<vmem>>, vector<8x8xbf16>
    %41 = tpu.transpose %39, [1, 0] : vector<8x8xbf16> -> vector<8x8xbf16>
    %cst_28 = arith.constant dense<0.000000e+00> : vector<8x8xf32>
    %42 = tpu.matmul %38, %41, %cst_28 {dimension_numbers = #tpu.dot_dimension_numbers<[1], [0], [0], [1], [0, 0, 1, 1], [], []>} : vector<8x8xbf16>, vector<8x8xbf16>, vector<8x8xf32> -> vector<8x8xf32>
    %cst_29 = arith.constant 0.353553385 : f32
    %43 = vector.broadcast %cst_29 : f32 to vector<8x8xf32>
    %44 = arith.mulf %42, %43 : vector<8x8xf32>
    %c0_30 = arith.constant 0 : index
    %c1 = arith.constant 1 : index
    %c0_31 = arith.constant 0 : index
    %c0_32 = arith.constant 0 : index
    %45 = vector.load %arg3[%c0_30, %c1, %c0_31, %c0_32] : memref<1x4x8x8xbf16, #tpu.memory_space<vmem>>, vector<1x1x8x8xbf16>
    %46 = vector.shape_cast %45 : vector<1x1x8x8xbf16> to vector<8x8xbf16>
    %47 = arith.extf %46 : vector<8x8xbf16> to vector<8x8xf32>
    %48 = arith.addf %44, %47 : vector<8x8xf32>
    %cst_33 = arith.constant dense<0xFF800000> : vector<8xf32>
    %49 = vector.multi_reduction <maximumf>, %48, %cst_33 [1] : vector<8x8xf32> to vector<8xf32>
    %50 = vector.shape_cast %49 : vector<8xf32> to vector<8x1xf32>
    %51 = vector.broadcast %50 : vector<8x1xf32> to vector<8x8xf32>
    %52 = arith.subf %48, %51 : vector<8x8xf32>
    %53 = math.exp %52 : vector<8x8xf32>
    %cst_34 = arith.constant dense<0.000000e+00> : vector<8xf32>
    %54 = vector.multi_reduction <add>, %53, %cst_34 [1] : vector<8x8xf32> to vector<8xf32>
    %55 = vector.shape_cast %54 : vector<8xf32> to vector<8x1xf32>
    %56 = tpu.reciprocal %55 {approx = true} : vector<8x1xf32> -> vector<8x1xf32>
    %57 = vector.broadcast %56 : vector<8x1xf32> to vector<8x8xf32>
    %58 = arith.mulf %53, %57 : vector<8x8xf32>
    %59 = arith.truncf %58 : vector<8x8xf32> to vector<8x8xbf16>
    %cst_35 = arith.constant dense<0.000000e+00> : vector<8x8xf32>
    %60 = tpu.matmul %59, %40, %cst_35 {dimension_numbers = #tpu.dot_dimension_numbers<[1], [0], [0], [1], [0, 0, 1, 1], [], []>} : vector<8x8xbf16>, vector<8x8xbf16>, vector<8x8xf32> -> vector<8x8xf32>
    %61 = arith.truncf %60 : vector<8x8xf32> to vector<8x8xbf16>
    %c0_36 = arith.constant 0 : index
    %c8_37 = arith.constant 8 : index
    %62 = vector.load %arg14[%c0_36, %c8_37] : memref<8x32xbf16, #tpu.memory_space<vmem>>, vector<8x8xbf16>
    tpu.vector_store %arg14[%c0_36, %c8_37], %61 {strides = array<i32>} : memref<8x32xbf16, #tpu.memory_space<vmem>>, vector<8x8xbf16>,
    %c0_38 = arith.constant 0 : index
    %c16 = arith.constant 16 : index
    %63 = vector.load %arg13[%c0_38, %c16] : memref<8x96xbf16, #tpu.memory_space<vmem>>, vector<8x8xbf16>
    %c0_39 = arith.constant 0 : index
    %c48 = arith.constant 48 : index
    %64 = vector.load %arg13[%c0_39, %c48] : memref<8x96xbf16, #tpu.memory_space<vmem>>, vector<8x8xbf16>
    %c0_40 = arith.constant 0 : index
    %c80 = arith.constant 80 : index
    %65 = vector.load %arg13[%c0_40, %c80] : memref<8x96xbf16, #tpu.memory_space<vmem>>, vector<8x8xbf16>
    %66 = tpu.transpose %64, [1, 0] : vector<8x8xbf16> -> vector<8x8xbf16>
    %cst_41 = arith.constant dense<0.000000e+00> : vector<8x8xf32>
    %67 = tpu.matmul %63, %66, %cst_41 {dimension_numbers = #tpu.dot_dimension_numbers<[1], [0], [0], [1], [0, 0, 1, 1], [], []>} : vector<8x8xbf16>, vector<8x8xbf16>, vector<8x8xf32> -> vector<8x8xf32>
    %cst_42 = arith.constant 0.353553385 : f32
    %68 = vector.broadcast %cst_42 : f32 to vector<8x8xf32>
    %69 = arith.mulf %67, %68 : vector<8x8xf32>
    %c0_43 = arith.constant 0 : index
    %c2 = arith.constant 2 : index
    %c0_44 = arith.constant 0 : index
    %c0_45 = arith.constant 0 : index
    %70 = vector.load %arg3[%c0_43, %c2, %c0_44, %c0_45] : memref<1x4x8x8xbf16, #tpu.memory_space<vmem>>, vector<1x1x8x8xbf16>
    %71 = vector.shape_cast %70 : vector<1x1x8x8xbf16> to vector<8x8xbf16>
    %72 = arith.extf %71 : vector<8x8xbf16> to vector<8x8xf32>
    %73 = arith.addf %69, %72 : vector<8x8xf32>
    %cst_46 = arith.constant dense<0xFF800000> : vector<8xf32>
    %74 = vector.multi_reduction <maximumf>, %73, %cst_46 [1] : vector<8x8xf32> to vector<8xf32>
    %75 = vector.shape_cast %74 : vector<8xf32> to vector<8x1xf32>
    %76 = vector.broadcast %75 : vector<8x1xf32> to vector<8x8xf32>
    %77 = arith.subf %73, %76 : vector<8x8xf32>
    %78 = math.exp %77 : vector<8x8xf32>
    %cst_47 = arith.constant dense<0.000000e+00> : vector<8xf32>
    %79 = vector.multi_reduction <add>, %78, %cst_47 [1] : vector<8x8xf32> to vector<8xf32>
    %80 = vector.shape_cast %79 : vector<8xf32> to vector<8x1xf32>
    %81 = tpu.reciprocal %80 {approx = true} : vector<8x1xf32> -> vector<8x1xf32>
    %82 = vector.broadcast %81 : vector<8x1xf32> to vector<8x8xf32>
    %83 = arith.mulf %78, %82 : vector<8x8xf32>
    %84 = arith.truncf %83 : vector<8x8xf32> to vector<8x8xbf16>
    %cst_48 = arith.constant dense<0.000000e+00> : vector<8x8xf32>
    %85 = tpu.matmul %84, %65, %cst_48 {dimension_numbers = #tpu.dot_dimension_numbers<[1], [0], [0], [1], [0, 0, 1, 1], [], []>} : vector<8x8xbf16>, vector<8x8xbf16>, vector<8x8xf32> -> vector<8x8xf32>
    %86 = arith.truncf %85 : vector<8x8xf32> to vector<8x8xbf16>
    %c0_49 = arith.constant 0 : index
    %c16_50 = arith.constant 16 : index
    %87 = vector.load %arg14[%c0_49, %c16_50] : memref<8x32xbf16, #tpu.memory_space<vmem>>, vector<8x8xbf16>
    tpu.vector_store %arg14[%c0_49, %c16_50], %86 {strides = array<i32>} : memref<8x32xbf16, #tpu.memory_space<vmem>>, vector<8x8xbf16>,
    %c0_51 = arith.constant 0 : index
    %c24 = arith.constant 24 : index
    %88 = vector.load %arg13[%c0_51, %c24] : memref<8x96xbf16, #tpu.memory_space<vmem>>, vector<8x8xbf16>
    %c0_52 = arith.constant 0 : index
    %c56 = arith.constant 56 : index
    %89 = vector.load %arg13[%c0_52, %c56] : memref<8x96xbf16, #tpu.memory_space<vmem>>, vector<8x8xbf16>
    %c0_53 = arith.constant 0 : index
    %c88 = arith.constant 88 : index
    %90 = vector.load %arg13[%c0_53, %c88] : memref<8x96xbf16, #tpu.memory_space<vmem>>, vector<8x8xbf16>
    %91 = tpu.transpose %89, [1, 0] : vector<8x8xbf16> -> vector<8x8xbf16>
    %cst_54 = arith.constant dense<0.000000e+00> : vector<8x8xf32>
    %92 = tpu.matmul %88, %91, %cst_54 {dimension_numbers = #tpu.dot_dimension_numbers<[1], [0], [0], [1], [0, 0, 1, 1], [], []>} : vector<8x8xbf16>, vector<8x8xbf16>, vector<8x8xf32> -> vector<8x8xf32>
    %cst_55 = arith.constant 0.353553385 : f32
    %93 = vector.broadcast %cst_55 : f32 to vector<8x8xf32>
    %94 = arith.mulf %92, %93 : vector<8x8xf32>
    %c0_56 = arith.constant 0 : index
    %c3 = arith.constant 3 : index
    %c0_57 = arith.constant 0 : index
    %c0_58 = arith.constant 0 : index
    %95 = vector.load %arg3[%c0_56, %c3, %c0_57, %c0_58] : memref<1x4x8x8xbf16, #tpu.memory_space<vmem>>, vector<1x1x8x8xbf16>
    %96 = vector.shape_cast %95 : vector<1x1x8x8xbf16> to vector<8x8xbf16>
    %97 = arith.extf %96 : vector<8x8xbf16> to vector<8x8xf32>
    %98 = arith.addf %94, %97 : vector<8x8xf32>
    %cst_59 = arith.constant dense<0xFF800000> : vector<8xf32>
    %99 = vector.multi_reduction <maximumf>, %98, %cst_59 [1] : vector<8x8xf32> to vector<8xf32>
    %100 = vector.shape_cast %99 : vector<8xf32> to vector<8x1xf32>
    %101 = vector.broadcast %100 : vector<8x1xf32> to vector<8x8xf32>
    %102 = arith.subf %98, %101 : vector<8x8xf32>
    %103 = math.exp %102 : vector<8x8xf32>
    %cst_60 = arith.constant dense<0.000000e+00> : vector<8xf32>
    %104 = vector.multi_reduction <add>, %103, %cst_60 [1] : vector<8x8xf32> to vector<8xf32>
    %105 = vector.shape_cast %104 : vector<8xf32> to vector<8x1xf32>
    %106 = tpu.reciprocal %105 {approx = true} : vector<8x1xf32> -> vector<8x1xf32>
    %107 = vector.broadcast %106 : vector<8x1xf32> to vector<8x8xf32>
    %108 = arith.mulf %103, %107 : vector<8x8xf32>
    %109 = arith.truncf %108 : vector<8x8xf32> to vector<8x8xbf16>
    %cst_61 = arith.constant dense<0.000000e+00> : vector<8x8xf32>
    %110 = tpu.matmul %109, %90, %cst_61 {dimension_numbers = #tpu.dot_dimension_numbers<[1], [0], [0], [1], [0, 0, 1, 1], [], []>} : vector<8x8xbf16>, vector<8x8xbf16>, vector<8x8xf32> -> vector<8x8xf32>
    %111 = arith.truncf %110 : vector<8x8xf32> to vector<8x8xbf16>
    %c0_62 = arith.constant 0 : index
    %c24_63 = arith.constant 24 : index
    %112 = vector.load %arg14[%c0_62, %c24_63] : memref<8x32xbf16, #tpu.memory_space<vmem>>, vector<8x8xbf16>
    tpu.vector_store %arg14[%c0_62, %c24_63], %111 {strides = array<i32>} : memref<8x32xbf16, #tpu.memory_space<vmem>>, vector<8x8xbf16>,
    %c0_64 = arith.constant 0 : index
    %c0_65 = arith.constant 0 : index
    %113 = vector.load %arg12[%c0_64, %c0_65] : memref<8x32xf32, #tpu.memory_space<vmem>>, vector<8x32xf32>
    %c0_66 = arith.constant 0 : index
    %c0_67 = arith.constant 0 : index
    %114 = vector.load %arg14[%c0_66, %c0_67] : memref<8x32xbf16, #tpu.memory_space<vmem>>, vector<8x32xbf16>
    %c0_68 = arith.constant 0 : index
    %c0_69 = arith.constant 0 : index
    %c0_70 = arith.constant 0 : index
    %115 = vector.load %arg8[%c0_68, %c0_69, %c0_70] : memref<1x32x32xbf16, #tpu.memory_space<vmem>>, vector<1x32x32xbf16>
    %116 = vector.shape_cast %115 : vector<1x32x32xbf16> to vector<32x32xbf16>
    %cst_71 = arith.constant dense<0.000000e+00> : vector<8x32xf32>
    %117 = tpu.matmul %114, %116, %cst_71 {dimension_numbers = #tpu.dot_dimension_numbers<[1], [0], [0], [1], [0, 0, 1, 1], [], []>} : vector<8x32xbf16>, vector<32x32xbf16>, vector<8x32xf32> -> vector<8x32xf32>
    %118 = arith.addf %113, %117 : vector<8x32xf32>
    %c0_72 = arith.constant 0 : index
    %c0_73 = arith.constant 0 : index
    %119 = vector.load %arg12[%c0_72, %c0_73] : memref<8x32xf32, #tpu.memory_space<vmem>>, vector<8x32xf32>
    tpu.vector_store %arg12[%c0_72, %c0_73], %118 {strides = array<i32>} : memref<8x32xf32, #tpu.memory_space<vmem>>, vector<8x32xf32>,
    %c0_i32_74 = arith.constant 0 : i32
    %120 = arith.cmpi eq, %arg1, %c0_i32_74 : i32
    %121 = arith.extui %120 : i1 to i32
    %c0_i32_75 = arith.constant 0 : i32
    %122 = arith.cmpi ne, %121, %c0_i32_75 : i32
    scf.if %122 {
      %c0_76 = arith.constant 0 : index
      %c0_77 = arith.constant 0 : index
      %c0_78 = arith.constant 0 : index
      %123 = vector.load %arg2[%c0_76, %c0_77, %c0_78] : memref<1x8x32xf32, #tpu.memory_space<vmem>>, vector<1x8x32xf32>
      %124 = vector.shape_cast %123 : vector<1x8x32xf32> to vector<8x32xf32>
      %c0_79 = arith.constant 0 : index
      %c0_80 = arith.constant 0 : index
      %125 = vector.load %arg12[%c0_79, %c0_80] : memref<8x32xf32, #tpu.memory_space<vmem>>, vector<8x32xf32>
      %126 = arith.addf %124, %125 : vector<8x32xf32>
      %c0_81 = arith.constant 0 : index
      %c0_82 = arith.constant 0 : index
      %127 = vector.load %arg9[%c0_81, %c0_82] : memref<1x32xf32, #tpu.memory_space<vmem>>, vector<1x32xf32>
      %128 = vector.broadcast %127 : vector<1x32xf32> to vector<8x32xf32>
      %129 = arith.addf %126, %128 : vector<8x32xf32>
      %c0_83 = arith.constant 0 : index
      %c0_84 = arith.constant 0 : index
      %c0_85 = arith.constant 0 : index
      %130 = vector.load %arg10[%c0_83, %c0_84, %c0_85] : memref<1x8x32xf32, #tpu.memory_space<vmem>>, vector<1x8x32xf32>
      %131 = vector.shape_cast %130 : vector<1x8x32xf32> to vector<8x32xf32>
      %132 = vector.shape_cast %129 : vector<8x32xf32> to vector<1x8x32xf32>
      tpu.vector_store %arg10[%c0_83, %c0_84, %c0_85], %132 {strides = array<i32>} : memref<1x8x32xf32, #tpu.memory_space<vmem>>, vector<1x8x32xf32>,
    } else {
    }
    return
  }
  func.func @transform_0(%arg0: i32, %arg1: i32) -> (i32, i32, i32) {
    %c0_i32 = arith.constant 0 : i32
    %c0_i32_0 = arith.constant 0 : i32
    %c0_i32_1 = arith.constant 0 : i32
    return %arg0, %c0_i32, %c0_i32_0 : i32, i32, i32
  }
  func.func @transform_1(%arg0: i32, %arg1: i32) -> (i32, i32, i32, i32) {
    %c0_i32 = arith.constant 0 : i32
    %c0_i32_0 = arith.constant 0 : i32
    %c0_i32_1 = arith.constant 0 : i32
    return %arg0, %arg1, %c0_i32, %c0_i32_0 : i32, i32, i32, i32
  }
  func.func @transform_2(%arg0: i32, %arg1: i32) -> (i32, i32) {
    %c0_i32 = arith.constant 0 : i32
    %c0_i32_0 = arith.constant 0 : i32
    %c0_i32_1 = arith.constant 0 : i32
    return %c0_i32, %c0_i32_0 : i32, i32
  }
  func.func @transform_3(%arg0: i32, %arg1: i32) -> (i32, i32) {
    %c0_i32 = arith.constant 0 : i32
    %c0_i32_0 = arith.constant 0 : i32
    %c0_i32_1 = arith.constant 0 : i32
    return %c0_i32, %c0_i32_0 : i32, i32
  }
  func.func @transform_4(%arg0: i32, %arg1: i32) -> (i32, i32, i32) {
    %c0_i32 = arith.constant 0 : i32
    %c0_i32_0 = arith.constant 0 : i32
    %c0_i32_1 = arith.constant 0 : i32
    return %arg1, %c0_i32, %c0_i32_0 : i32, i32, i32
  }
  func.func @transform_5(%arg0: i32, %arg1: i32) -> (i32, i32, i32) {
    %c0_i32 = arith.constant 0 : i32
    %c0_i32_0 = arith.constant 0 : i32
    %c0_i32_1 = arith.constant 0 : i32
    return %arg1, %c0_i32, %c0_i32_0 : i32, i32, i32
  }
  func.func @transform_6(%arg0: i32, %arg1: i32) -> (i32, i32, i32) {
    %c0_i32 = arith.constant 0 : i32
    %c0_i32_0 = arith.constant 0 : i32
    %c0_i32_1 = arith.constant 0 : i32
    return %arg1, %c0_i32, %c0_i32_0 : i32, i32, i32
  }
  func.func @transform_7(%arg0: i32, %arg1: i32) -> (i32, i32) {
    %c0_i32 = arith.constant 0 : i32
    %c0_i32_0 = arith.constant 0 : i32
    %c0_i32_1 = arith.constant 0 : i32
    return %c0_i32, %c0_i32_0 : i32, i32
  }
  func.func @transform_8(%arg0: i32, %arg1: i32) -> (i32, i32, i32) {
    %c0_i32 = arith.constant 0 : i32
    %c0_i32_0 = arith.constant 0 : i32
    %c0_i32_1 = arith.constant 0 : i32
    return %arg0, %c0_i32, %c0_i32_0 : i32, i32, i32
  }
}

</mosaic_0001>

<llo_original>
// kernel: tpu_custom_call.1
$region0: #{tpu_custom_call.1}
  #allocation0 [shape = 'u32[]', space=smem, size = 0x4, offset = 0x4, fixed_abs, tag = 'smem constant byte address 0x4 - core index']
  #allocation1 [shape = 'u32[72,128]{1,0:T(1,128)}', space=vmem, size = 0x9000, scoped, tag = 'internal scratch']
  #allocation2 [shape = 'bf16[8,32]{1,0:T(8,128)(2,1)}', space=vmem, size = 0x800, scoped, tag = 'scratch operand']
  #allocation3 [shape = 'f32[8,32]{1,0:T(8,128)}', space=vmem, size = 0x1000, scoped, tag = 'scratch operand']
  #allocation4 [shape = 'bf16[8,96]{1,0:T(8,128)(2,1)}', space=vmem, size = 0x800, scoped, tag = 'scratch operand']
  #allocation5 [shape = 'bf16[8,32]{1,0:T(8,128)(2,1)}', space=vmem, size = 0x800, scoped, tag = 'scratch operand']
  %s0 = inlined_call_operand.hbm [shape: f32[2,8,32], index: 0, kind: input, shape index: {}]
  %s1 = inlined_call_operand.hbm [shape: bf16[2,4,8,8], index: 1, kind: input, shape index: {}]
  %s2 = inlined_call_operand.vmem [shape: f32[1,32], index: 2, kind: input, shape index: {}]
  %s3 = inlined_call_operand.vmem [shape: f32[1,32], index: 3, kind: input, shape index: {}]
  %s4 = inlined_call_operand.hbm [shape: bf16[1,32,96], index: 4, kind: input, shape index: {}]
  %s5 = inlined_call_operand.vmem [shape: f32[1,1,96], index: 5, kind: input, shape index: {}]
  %s6 = inlined_call_operand.hbm [shape: bf16[1,32,32], index: 6, kind: input, shape index: {}]
  %s7 = inlined_call_operand.vmem [shape: f32[1,32], index: 7, kind: input, shape index: {}]
  %s8 = inlined_call_operand.hbm [shape: f32[2,8,32], index: 8, kind: output, shape index: {}]
  %s9 = sld [smem:[#allocation0]]
  $region89: #{tpu_custom_call.1} parent=0
    _
  %s11 = ssub.s32 1, %s9
  %s12 = scalar_select 0, %s11, %s9
  $region1: #{tpu_custom_call.1} parent=0
    #allocation6 [shape = 'u8[8192]{0}', space=vmem, size = 0x2000, scoped, tag = 'input window, operand 0']
    #allocation7 [shape = 's32[2]{0}', space=sflag, size = 0x8, scoped, tag = 'scoped memory for tpu_custom_call.1']
    #allocation8 [shape = 's32[2]{0}', space=sflag, size = 0x8, scoped, tag = 'scoped memory for tpu_custom_call.1']
    #allocation9 [shape = 'u8[16384]{0}', space=vmem, size = 0x4000, scoped, tag = 'input window, operand 1']
    #allocation10 [shape = 's32[2]{0}', space=sflag, size = 0x8, scoped, tag = 'scoped memory for tpu_custom_call.1']
    #allocation11 [shape = 'u8[8192]{0}', space=vmem, size = 0x2000, scoped, tag = 'input window, operand 4, single buffered']
    #allocation12 [shape = 'u8[8192]{0}', space=vmem, size = 0x2000, scoped, tag = 'input window, operand 6, single buffered']
    #allocation13 [shape = 's32[1]{0}', space=sflag, size = 0x4, scoped, tag = 'scoped memory for tpu_custom_call.1']
    #allocation14 [shape = 'u8[8192]{0}', space=vmem, size = 0x2000, scoped, tag = 'output window, operand 0']
    %13 = vsyncpa [#allocation7], 0
    %s14 = scalar_lea.sflag [#allocation7], 1
    %15 = vsyncpa %s14, 0
    %16 = vsyncpa [#allocation10], 0
    %s17 = scalar_lea.sflag [#allocation10], 1
    %18 = vsyncpa %s17, 0
    %19 = vsyncpa [#allocation13], 0
    %20 = vsyncpa [#allocation8], 0
    %s21 = scalar_lea.sflag [#allocation8], 1
    %22 = vsyncpa %s21, 0
    loop: start=0, step=1, limit=4
    $region2: #{tpu_custom_call.1} parent=1 // loop_pre_header
      _
    $region3: #{tpu_custom_call.1} parent=1 // loop_header
      %s24 = sphi 0, %s28
      %p25 = scmp.ge.s32.totalorder %s24, 4
      %s31 = sphi 0, %s43
      %s32 = sphi 0, %s39
      %s33 = sphi 0, %s31
      %s34 = sphi 0, %s32
      %s35 = sphi 0, %s33
      %s36 = sphi 0, %s34
      %s46 = sphi 0, %s48
      %s49 = sphi 0, %s46
      %s50 = sphi 0, %s49
      %s66 = sphi 0, %s50
      %s74 = sphi 0, %s76
      %s77 = sphi 0, %s74
      %s78 = sphi 0, %s77
      %s94 = sphi 0, %s78
      %s98 = sphi 0, %s98
      %s100 = sphi 0, %s98
      %s101 = sphi 0, %s100
      %s115 = sphi 0, %s101
      %s119 = sphi 0, %s119
      %s121 = sphi 0, %s119
      %s122 = sphi 0, %s121
      %s136 = sphi 0, %s122
      %s142 = sphi 0, %s144
      %s145 = sphi 0, %s142
      %s146 = sphi 0, %s145
      %s162 = sphi 0, %s146
      %s168 = sphi 0, %s170
      %s171 = sphi 0, %s168
      %s172 = sphi 0, %s171
      %s188 = sphi 0, %s172
      %s194 = sphi 0, %s196
      %s197 = sphi 0, %s194
      %s198 = sphi 0, %s197
      %s214 = sphi 0, %s198
      %s218 = sphi 0, %s218
      %s220 = sphi 0, %s218
      %s221 = sphi 0, %s220
      %s235 = sphi 0, %s221
      %s241 = sphi 0, %s243
      %s244 = sphi 0, %s241
      %s245 = sphi 0, %s244
      %s261 = sphi 0, %s245
    $region4: #{tpu_custom_call.1} parent=1 // loop_header_branch
      %27 = sbr.rel (%p25) target = $region8
    $region5: #{tpu_custom_call.1} parent=1 // loop_body
      %s29 = ssub.s32 %s24, 1
      %s30 = ssub.s32 %s24, 2
      %s37 = sadd.s32 1, %s32
      %p38 = scmp.ge.s32.totalorder %s37, 1
      %s39 = scalar_select %p38, 0, %s37
      %s40 = sadd.s32 1, %s31
      %s41 = scalar_select %p38, %s40, %s31
      %p42 = scmp.ge.s32.totalorder %s41, 2
      %s43 = scalar_select %p42, 0, %s41
      %s44 = ssub.s32 %s31, %s43
      %p45 = scmp.eq.s32.totalorder %s44, 0
      %s47 = sadd.s32 %s46, 1
      %s48 = scalar_select %p45, %s46, %s47
      %p51 = pneg %p45
      %p52 = scmp.eq.s32.totalorder %s24, 1
      %p53 = por %p51, %p52
      %p54 = scmp.ne.s32.totalorder %s46, %s49
      %p55 = scmp.eq.s32.totalorder %s24, 0
      %p56 = por %p54, %p55
      %p57 = scmp.ne.s32.totalorder %s46, %s49
      %p58 = scmp.eq.s32.totalorder %s29, 1
      %p59 = por %p57, %p58
      %p60 = scmp.ne.s32.totalorder %s49, %s50
      %p61 = scmp.eq.s32.totalorder %s29, 0
      %p62 = por %p60, %p61
      %p63 = scmp.ne.s32.totalorder %s49, %s50
      %p64 = scmp.eq.s32.totalorder %s30, 1
      %p65 = por %p63, %p64
      %p67 = scmp.ne.s32.totalorder %s50, %s66
      %p68 = scmp.eq.s32.totalorder %s30, 0
      %p69 = por %p67, %p68
      %s70 = ssub.s32 %s31, %s43
      %s71 = ssub.s32 %s32, %s39
      %s72 = sor.u32 %s70, %s71
      %p73 = scmp.eq.s32.totalorder %s72, 0
      %s75 = sadd.s32 %s74, 1
      %s76 = scalar_select %p73, %s74, %s75
      %p79 = pneg %p73
      %p80 = scmp.eq.s32.totalorder %s24, 1
      %p81 = por %p79, %p80
      %p82 = scmp.ne.s32.totalorder %s74, %s77
      %p83 = scmp.eq.s32.totalorder %s24, 0
      %p84 = por %p82, %p83
      %p85 = scmp.ne.s32.totalorder %s74, %s77
      %p86 = scmp.eq.s32.totalorder %s29, 1
      %p87 = por %p85, %p86
      %p88 = scmp.ne.s32.totalorder %s77, %s78
      %p89 = scmp.eq.s32.totalorder %s29, 0
      %p90 = por %p88, %p89
      %p91 = scmp.ne.s32.totalorder %s77, %s78
      %p92 = scmp.eq.s32.totalorder %s30, 1
      %p93 = por %p91, %p92
      %p95 = scmp.ne.s32.totalorder %s78, %s94
      %p96 = scmp.eq.s32.totalorder %s30, 0
      %p97 = por %p95, %p96
      %s99 = sadd.s32 %s98, 1
      %p102 = scmp.eq.s32.totalorder %s24, 1
      %p103 = scmp.ne.s32.totalorder %s98, %s100
      %p104 = scmp.eq.s32.totalorder %s24, 0
      %p105 = por %p103, %p104
      %p106 = scmp.ne.s32.totalorder %s98, %s100
      %p107 = scmp.eq.s32.totalorder %s29, 1
      %p108 = por %p106, %p107
      %p109 = scmp.ne.s32.totalorder %s100, %s101
      %p110 = scmp.eq.s32.totalorder %s29, 0
      %p111 = por %p109, %p110
      %p112 = scmp.ne.s32.totalorder %s100, %s101
      %p113 = scmp.eq.s32.totalorder %s30, 1
      %p114 = por %p112, %p113
      %p116 = scmp.ne.s32.totalorder %s101, %s115
      %p117 = scmp.eq.s32.totalorder %s30, 0
      %p118 = por %p116, %p117
      %s120 = sadd.s32 %s119, 1
      %p123 = scmp.eq.s32.totalorder %s24, 1
      %p124 = scmp.ne.s32.totalorder %s119, %s121
      %p125 = scmp.eq.s32.totalorder %s24, 0
      %p126 = por %p124, %p125
      %p127 = scmp.ne.s32.totalorder %s119, %s121
      %p128 = scmp.eq.s32.totalorder %s29, 1
      %p129 = por %p127, %p128
      %p130 = scmp.ne.s32.totalorder %s121, %s122
      %p131 = scmp.eq.s32.totalorder %s29, 0
      %p132 = por %p130, %p131
      %p133 = scmp.ne.s32.totalorder %s121, %s122
      %p134 = scmp.eq.s32.totalorder %s30, 1
      %p135 = por %p133, %p134
      %p137 = scmp.ne.s32.totalorder %s122, %s136
      %p138 = scmp.eq.s32.totalorder %s30, 0
      %p139 = por %p137, %p138
      %s140 = ssub.s32 %s32, %s39
      %p141 = scmp.eq.s32.totalorder %s140, 0
      %s143 = sadd.s32 %s142, 1
      %s144 = scalar_select %p141, %s142, %s143
      %p147 = pneg %p141
      %p148 = scmp.eq.s32.totalorder %s24, 1
      %p149 = por %p147, %p148
      %p150 = scmp.ne.s32.totalorder %s142, %s145
      %p151 = scmp.eq.s32.totalorder %s24, 0
      %p152 = por %p150, %p151
      %p153 = scmp.ne.s32.totalorder %s142, %s145
      %p154 = scmp.eq.s32.totalorder %s29, 1
      %p155 = por %p153, %p154
      %p156 = scmp.ne.s32.totalorder %s145, %s146
      %p157 = scmp.eq.s32.totalorder %s29, 0
      %p158 = por %p156, %p157
      %p159 = scmp.ne.s32.totalorder %s145, %s146
      %p160 = scmp.eq.s32.totalorder %s30, 1
      %p161 = por %p159, %p160
      %p163 = scmp.ne.s32.totalorder %s146, %s162
      %p164 = scmp.eq.s32.totalorder %s30, 0
      %p165 = por %p163, %p164
      %s166 = ssub.s32 %s32, %s39
      %p167 = scmp.eq.s32.totalorder %s166, 0
      %s169 = sadd.s32 %s168, 1
      %s170 = scalar_select %p167, %s168, %s169
      %p173 = pneg %p167
      %p174 = scmp.eq.s32.totalorder %s24, 1
      %p175 = por %p173, %p174
      %p176 = scmp.ne.s32.totalorder %s168, %s171
      %p177 = scmp.eq.s32.totalorder %s24, 0
      %p178 = por %p176, %p177
      %p179 = scmp.ne.s32.totalorder %s168, %s171
      %p180 = scmp.eq.s32.totalorder %s29, 1
      %p181 = por %p179, %p180
      %p182 = scmp.ne.s32.totalorder %s171, %s172
      %p183 = scmp.eq.s32.totalorder %s29, 0
      %p184 = por %p182, %p183
      %p185 = scmp.ne.s32.totalorder %s171, %s172
      %p186 = scmp.eq.s32.totalorder %s30, 1
      %p187 = por %p185, %p186
      %p189 = scmp.ne.s32.totalorder %s172, %s188
      %p190 = scmp.eq.s32.totalorder %s30, 0
      %p191 = por %p189, %p190
      %s192 = ssub.s32 %s32, %s39
      %p193 = scmp.eq.s32.totalorder %s192, 0
      %s195 = sadd.s32 %s194, 1
      %s196 = scalar_select %p193, %s194, %s195
      %p199 = pneg %p193
      %p200 = scmp.eq.s32.totalorder %s24, 1
      %p201 = por %p199, %p200
      %p202 = scmp.ne.s32.totalorder %s194, %s197
      %p203 = scmp.eq.s32.totalorder %s24, 0
      %p204 = por %p202, %p203
      %p205 = scmp.ne.s32.totalorder %s194, %s197
      %p206 = scmp.eq.s32.totalorder %s29, 1
      %p207 = por %p205, %p206
      %p208 = scmp.ne.s32.totalorder %s197, %s198
      %p209 = scmp.eq.s32.totalorder %s29, 0
      %p210 = por %p208, %p209
      %p211 = scmp.ne.s32.totalorder %s197, %s198
      %p212 = scmp.eq.s32.totalorder %s30, 1
      %p213 = por %p211, %p212
      %p215 = scmp.ne.s32.totalorder %s198, %s214
      %p216 = scmp.eq.s32.totalorder %s30, 0
      %p217 = por %p215, %p216
      %s219 = sadd.s32 %s218, 1
      %p222 = scmp.eq.s32.totalorder %s24, 1
      %p223 = scmp.ne.s32.totalorder %s218, %s220
      %p224 = scmp.eq.s32.totalorder %s24, 0
      %p225 = por %p223, %p224
      %p226 = scmp.ne.s32.totalorder %s218, %s220
      %p227 = scmp.eq.s32.totalorder %s29, 1
      %p228 = por %p226, %p227
      %p229 = scmp.ne.s32.totalorder %s220, %s221
      %p230 = scmp.eq.s32.totalorder %s29, 0
      %p231 = por %p229, %p230
      %p232 = scmp.ne.s32.totalorder %s220, %s221
      %p233 = scmp.eq.s32.totalorder %s30, 1
      %p234 = por %p232, %p233
      %p236 = scmp.ne.s32.totalorder %s221, %s235
      %p237 = scmp.eq.s32.totalorder %s30, 0
      %p238 = por %p236, %p237
      %s239 = ssub.s32 %s31, %s43
      %p240 = scmp.eq.s32.totalorder %s239, 0
      %s242 = sadd.s32 %s241, 1
      %s243 = scalar_select %p240, %s241, %s242
      %p246 = pneg %p240
      %p247 = scmp.eq.s32.totalorder %s24, 1
      %p248 = por %p246, %p247
      %p249 = scmp.ne.s32.totalorder %s241, %s244
      %p250 = scmp.eq.s32.totalorder %s24, 0
      %p251 = por %p249, %p250
      %p252 = scmp.ne.s32.totalorder %s241, %s244
      %p253 = scmp.eq.s32.totalorder %s29, 1
      %p254 = por %p252, %p253
      %p255 = scmp.ne.s32.totalorder %s244, %s245
      %p256 = scmp.eq.s32.totalorder %s29, 0
      %p257 = por %p255, %p256
      %p258 = scmp.ne.s32.totalorder %s244, %s245
      %p259 = scmp.eq.s32.totalorder %s30, 1
      %p260 = por %p258, %p259
      %p262 = scmp.ne.s32.totalorder %s245, %s261
      %p263 = scmp.eq.s32.totalorder %s30, 0
      %p264 = por %p262, %p263
      %p265 = scmp.le.s32.totalorder 1, %s24
      %p266 = scmp.lt.s32.totalorder %s24, 3
      %p267 = pnand %p265, %p266
      %p268 = pneg %p267
      // Predicated region
      $region9: #{tpu_custom_call.1} parent=5 // pred_check
        _
      $region10: #{tpu_custom_call.1} parent=5 // pred_check_branch
        %270 = sbr.rel (%p267) target = $region12
      $region11: #{tpu_custom_call.1} parent=5 // pred_region
        %s271 = ssub.s32 %s24, 1
        // Predicated region
        $region13: #{tpu_custom_call.1} parent=11 // pred_check
          %p272 = pneg %p111
        $region14: #{tpu_custom_call.1} parent=11 // pred_check_branch
          %274 = sbr.rel (%p272) target = $region16
        $region15: #{tpu_custom_call.1} parent=11 // pred_region
          _
        $region16: #{tpu_custom_call.1} parent=11 // pred_fallthru
          _
        // Predicated region
        $region17: #{tpu_custom_call.1} parent=11 // pred_check
          %p275 = pneg %p132
        $region18: #{tpu_custom_call.1} parent=11 // pred_check_branch
          %277 = sbr.rel (%p275) target = $region20
        $region19: #{tpu_custom_call.1} parent=11 // pred_region
          _
        $region20: #{tpu_custom_call.1} parent=11 // pred_fallthru
          _
        // Predicated region
        $region21: #{tpu_custom_call.1} parent=11 // pred_check
          %p278 = pneg %p158
        $region22: #{tpu_custom_call.1} parent=11 // pred_check_branch
          %280 = sbr.rel (%p278) target = $region24
        $region23: #{tpu_custom_call.1} parent=11 // pred_region
          %282 = vsyncadd [#allocation10], 0
          %s283 = smul.addr %s34, 4
          %s284 = smul.addr %s283, 4
          %s285 = scalar_lea.hbm %s4, %s284
          %s286 = sshll.u32 %s285, 4
          %s287 = int_to_ptr.hbm [resolvable:$true] %s286
          %s288 = sshll.u32 [#allocation11], 4
          %s289 = int_to_ptr.vmem [resolvable:$true] %s288
          %294 = dma.hbm_to_vmem [thread:$0]  %s287, 256, %s289, [#allocation10], 64, 64, 4
        $region24: #{tpu_custom_call.1} parent=11 // pred_fallthru
          _
        // Predicated region
        $region25: #{tpu_custom_call.1} parent=11 // pred_check
          %p295 = pneg %p184
        $region26: #{tpu_custom_call.1} parent=11 // pred_check_branch
          %297 = sbr.rel (%p295) target = $region28
        $region27: #{tpu_custom_call.1} parent=11 // pred_region
          %p298 = scmp.lt.s32.totalorder %s34, 0
          %s299 = scalar_select %p298, %s34, 0
          %s300 = scalar_lea.vmem %s5, %s299
        $region28: #{tpu_custom_call.1} parent=11 // pred_fallthru
          _
        // Predicated region
        $region29: #{tpu_custom_call.1} parent=11 // pred_check
          %p301 = pneg %p210
        $region30: #{tpu_custom_call.1} parent=11 // pred_check_branch
          %303 = sbr.rel (%p301) target = $region32
        $region31: #{tpu_custom_call.1} parent=11 // pred_region
          %305 = vsyncadd [#allocation13], 0
          %s306 = smul.addr %s34, 4
          %s307 = smul.addr %s306, 4
          %s308 = scalar_lea.hbm %s6, %s307
          %s309 = sshll.u32 %s308, 4
          %s310 = int_to_ptr.hbm [resolvable:$true] %s309
          %s311 = sshll.u32 [#allocation12], 4
          %s312 = int_to_ptr.vmem [resolvable:$true] %s311
          %317 = dma.hbm_to_vmem [thread:$0]  %s310, 256, %s312, [#allocation13], 64, 64, 4
        $region32: #{tpu_custom_call.1} parent=11 // pred_fallthru
          _
        // Predicated region
        $region33: #{tpu_custom_call.1} parent=11 // pred_check
          %p318 = pneg %p231
        $region34: #{tpu_custom_call.1} parent=11 // pred_check_branch
          %320 = sbr.rel (%p318) target = $region36
        $region35: #{tpu_custom_call.1} parent=11 // pred_region
          _
        $region36: #{tpu_custom_call.1} parent=11 // pred_fallthru
          _
      $region12: #{tpu_custom_call.1} parent=5 // pred_fallthru
        _
      %p321 = scmp.lt.s32.totalorder %s24, 2
      // Predicated region
      $region37: #{tpu_custom_call.1} parent=5 // pred_check
        %p322 = pneg %p321
      $region38: #{tpu_custom_call.1} parent=5 // pred_check_branch
        %324 = sbr.rel (%p322) target = $region40
      $region39: #{tpu_custom_call.1} parent=5 // pred_region
        // Predicated region
        $region41: #{tpu_custom_call.1} parent=39 // pred_check
          %p325 = pneg %p56
        $region42: #{tpu_custom_call.1} parent=39 // pred_check_branch
          %327 = sbr.rel (%p325) target = $region44
        $region43: #{tpu_custom_call.1} parent=39 // pred_region
          %s328 = sand.u32 %s46, 1
          %s329 = scalar_lea.sflag [#allocation7], %s328
          %s330 = sand.u32 %s46, 1
          %s331 = smul.addr %s330, 8
          %s332 = scalar_lea.vmem [#allocation6], %s331
          %334 = vsyncadd %s329, 0
          %s335 = smul.addr %s31, 8
          %s336 = scalar_lea.hbm %s0, %s335
          %s338 = sshll.u32 %s336, 4
          %s339 = int_to_ptr.hbm [resolvable:$true] %s338
          %s340 = sshll.u32 %s332, 4
          %s341 = int_to_ptr.vmem [resolvable:$true] %s340
          %343 = dma.hbm_to_vmem [thread:$0]  %s339, 128, %s341, %s329
        $region44: #{tpu_custom_call.1} parent=39 // pred_fallthru
          _
        // Predicated region
        $region45: #{tpu_custom_call.1} parent=39 // pred_check
          %p344 = pneg %p84
        $region46: #{tpu_custom_call.1} parent=39 // pred_check_branch
          %346 = sbr.rel (%p344) target = $region48
        $region47: #{tpu_custom_call.1} parent=39 // pred_region
          %s347 = sand.u32 %s24, 1
          %s348 = scalar_lea.sflag [#allocation10], %s347
          %s349 = sand.u32 %s74, 1
          %s350 = smul.addr %s349, 16
          %s351 = scalar_lea.vmem [#allocation9], %s350
          %s352 = smul.u32 4, %s32
          %354 = vsyncadd %s348, 0
          %s355 = smul.addr %s31, 4
          %s356 = sadd.s32 %s352, %s355
          %s357 = smul.addr %s356, 4
          %s358 = scalar_lea.hbm %s1, %s357
          %s359 = sshll.u32 %s358, 4
          %s360 = int_to_ptr.hbm [resolvable:$true] %s359
          %s361 = sshll.u32 %s351, 4
          %s362 = int_to_ptr.vmem [resolvable:$true] %s361
          %367 = dma.hbm_to_vmem [thread:$0]  %s360, 256, %s362, %s348, 64, 64, 4
        $region48: #{tpu_custom_call.1} parent=39 // pred_fallthru
          _
      $region40: #{tpu_custom_call.1} parent=5 // pred_fallthru
        _
      %p368 = scmp.le.s32.totalorder 1, %s24
      %p369 = scmp.lt.s32.totalorder %s24, 3
      %p370 = pnand %p368, %p369
      %p371 = pneg %p370
      // Predicated region
      $region49: #{tpu_custom_call.1} parent=5 // pred_check
        _
      $region50: #{tpu_custom_call.1} parent=5 // pred_check_branch
        %373 = sbr.rel (%p370) target = $region52
      $region51: #{tpu_custom_call.1} parent=5 // pred_region
        %s374 = ssub.s32 %s24, 1
        %s375 = sand.u32 %s49, 1
        %s376 = scalar_lea.sflag [#allocation7], %s375
        %s377 = sand.u32 %s49, 1
        %s378 = smul.addr %s377, 8
        %s379 = scalar_lea.vmem [#allocation6], %s378
        // Predicated region
        $region53: #{tpu_custom_call.1} parent=51 // pred_check
          %p380 = pneg %p62
        $region54: #{tpu_custom_call.1} parent=51 // pred_check_branch
          %382 = sbr.rel (%p380) target = $region56
        $region55: #{tpu_custom_call.1} parent=51 // pred_region
          %384 = dma.done %s376, 128
        $region56: #{tpu_custom_call.1} parent=51 // pred_fallthru
          _
        %s385 = sand.u32 %s29, 1
        %s386 = scalar_lea.sflag [#allocation10], %s385
        %s387 = sand.u32 %s77, 1
        %s388 = smul.addr %s387, 16
        %s389 = scalar_lea.vmem [#allocation9], %s388
        // Predicated region
        $region57: #{tpu_custom_call.1} parent=51 // pred_check
          %p390 = pneg %p90
        $region58: #{tpu_custom_call.1} parent=51 // pred_check_branch
          %392 = sbr.rel (%p390) target = $region60
        $region59: #{tpu_custom_call.1} parent=51 // pred_region
          %394 = dma.done %s386, 256
        $region60: #{tpu_custom_call.1} parent=51 // pred_fallthru
          _
        // Predicated region
        $region61: #{tpu_custom_call.1} parent=51 // pred_check
          %p395 = pneg %p158
        $region62: #{tpu_custom_call.1} parent=51 // pred_check_branch
          %397 = sbr.rel (%p395) target = $region64
        $region63: #{tpu_custom_call.1} parent=51 // pred_region
          %399 = dma.done [#allocation10], 256
        $region64: #{tpu_custom_call.1} parent=51 // pred_fallthru
          _
        // Predicated region
        $region65: #{tpu_custom_call.1} parent=51 // pred_check
          %p400 = pneg %p210
        $region66: #{tpu_custom_call.1} parent=51 // pred_check_branch
          %402 = sbr.rel (%p400) target = $region68
        $region67: #{tpu_custom_call.1} parent=51 // pred_region
          %404 = dma.done [#allocation13], 256
        $region68: #{tpu_custom_call.1} parent=51 // pred_fallthru
          _
        %s405 = sand.u32 %s49, 1
        %s406 = scalar_lea.sflag [#allocation7], %s405
        %s407 = sand.u32 %s49, 1
        %s408 = smul.addr %s407, 8
        %s409 = scalar_lea.vmem [#allocation6], %s408
        %p410 = pneg %p62
        %p411 = pneg %p59
        %s412 = sand.u32 %s29, 1
        %s413 = scalar_lea.sflag [#allocation10], %s412
        %s414 = sand.u32 %s77, 1
        %s415 = smul.addr %s414, 16
        %s416 = scalar_lea.vmem [#allocation9], %s415
        %p417 = pneg %p90
        %p418 = pneg %p87
        %p419 = pneg %p111
        %p420 = pneg %p108
        %p421 = pneg %p132
        %p422 = pneg %p129
        %p423 = pneg %p158
        %p424 = pneg %p155
        %p425 = scmp.lt.s32.totalorder %s34, 0
        %s426 = scalar_select %p425, %s34, 0
        %s427 = scalar_lea.vmem %s5, %s426
        %p428 = pneg %p184
        %p429 = pneg %p181
        %p430 = pneg %p210
        %p431 = pneg %p207
        %p432 = pneg %p231
        %p433 = pneg %p228
        %p434 = pneg %p257
        %p435 = pneg %p254
        %s436 = sand.u32 %s244, 1
        %s437 = scalar_lea.sflag [#allocation8], %s436
        %s438 = sand.u32 %s244, 1
        %s439 = smul.addr %s438, 8
        %s440 = scalar_lea.vmem [#allocation14], %s439
        %s441 = smul.u32 4, %s34
        %p442 = scmp.lt.s32.totalorder %s34, 0
        %s443 = scalar_select %p442, %s34, 0
        %s444 = scalar_lea.vmem %s5, %s443
        %p446 = scmp.eq.s32.totalorder %s34, 0
        // Predicated region
        $region69: #{tpu_custom_call.1} parent=51 // pred_check
          %p447 = pneg %p446
        $region70: #{tpu_custom_call.1} parent=51 // pred_check_branch
          %449 = sbr.rel (%p447) target = $region72
        $region71: #{tpu_custom_call.1} parent=51 // pred_region
          %v450 = vld [vmem:[%s379] sm:$0xff]
          %v451 = vld [vmem:[%s2] sm:$0x1]
          %v452 = vld [vmem:[%s3] sm:$0x1]
          %vm453 = vcmask 261120
          %v454 = vsel %vm453, %v450, 0.0
          %455 = vadd.xlane.f32.xlu0 %v454
          %v456 = vpop.xlane.xlu0 %455
          %v457 = vrcp.pop 32.0
          %v458 = vmul.f32 32.0, %v457
          %v459 = vsub.f32 1.0, %v458
          %v460 = vmul.f32 %v457, %v459
          %v461 = vadd.f32 %v457, %v460
          %vm462 = vweird.f32 %v457
          %v463 = vsel %vm462, %v457, %v461
          %v464 = vmul.f32 %v456, %v463
          %v465 = vsub.f32 %v450, %v464
          %v466 = vmul.f32 %v465, %v465
          %v467 = vsel %vm453, %v466, 0.0
          %468 = vadd.xlane.f32.xlu0 %v467
          %v469 = vpop.xlane.xlu0 %468
          %v470 = vmul.f32 %v469, %v463
          %v471 = vadd.f32 %v470, 1e-05
          %v472 = vrsqrt.pop %v471
          %v473 = vmul.f32 %v472, %v471
          %v474 = vmul.f32 %v473, %v472
          %v475 = vmul.f32 0.5, %v474
          %v476 = vsub.f32 1.5, %v475
          %v477 = vmul.f32 %v472, %v476
          %vm478 = vweird.f32 %v471
          %vm479 = vweird.f32 %v472
          %vm480 = vmor %vm478, %vm479
          %v481 = vsel %vm480, %v472, %v477
          %v482 = vmul.f32 %v465, %v481
          %v484 = vperm.slane %v451, 0
          %v486 = vmul.f32 %v482, %v484
          %v488 = vperm.slane %v452, 0
          %v490 = vadd.f32 %v486, %v488
          %v491 = vpack.c.bf16 %v490, %v490
          %vm492 = vcmask 257024
          %493 = vst.msk [vmem:[#allocation2] sm:$0xf] %vm492, %v491
          %494 = vst.msk [vmem:[#allocation3] sm:$0xff] %vm453, 0.0
        $region72: #{tpu_custom_call.1} parent=51 // pred_fallthru
          _
        %v495 = vld [vmem:[#allocation2] sm:$0xf]
        %v496 = vld [vmem:[#allocation11] sm:$0xf]
        %v497 = vld [vmem:[#allocation11 + $0x4] sm:$0xf]
        %v498 = vld [vmem:[#allocation11 + $0x8] sm:$0xf]
        %v499 = vld [vmem:[#allocation11 + $0xc] sm:$0xf]
        %v500 = vld [vmem:[%s444] sm:$0x1]
        %v502 = vperm.slane %v500, 0
        %v508 = vunpack.c.l.b16 %v496
        %v509 = vunpack.c.l.b16 %v497
        %v510 = vunpack.c.l.b16 %v498
        %v511 = vunpack.c.l.b16 %v499
        %v512 = vpack.c.b16 %v509, %v508
        %v513 = vpack.c.b16 %v511, %v510
        %vm516 = vcmask 261120
        %v518 = vsel %vm516, %v495, 0
        %520 = vmatpush.bf16.msra.mxu0 0
        %521 = vmatpush.bf16.msra.mxu0 0
        %522 = vmatpush.bf16.msra.mxu0 0
        %523 = vmatpush.bf16.msra.mxu0 0
        %524 = vmatpush.bf16.msra.mxu0 0
        %525 = vmatpush.bf16.msra.mxu0 0
        %526 = vmatpush.bf16.msra.mxu0 %v513
        %527 = vmatpush.bf16.msra.mxu0 %v512
        %528 = vmatmul.bf16.gmra.mxu0 %v518
        %v529 = vpop.f32.mrf.mxu0
        %v530 = vadd.f32 %v502, %v529
        %v531 = vpop.f32.mrf.mxu0
        %532 = vdwg.mxu0
        %v533 = vpack.c.bf16 %v530, %v530
        %vm534 = vcmask 781312
        %535 = vst.msk [vmem:[#allocation4] sm:$0xf] %vm534, %v533
        %v536 = vld [vmem:[#allocation4] sm:$0xf]
        %v538 = vunpack.c.l.b16 %v536
        %v539 = vpack.c.b16 %v538, %v538
        %540 = vrot.lane.b32.xlu0 %v539, 96
        %v541 = vpop.permute.xlu0 %540
        %vm542 = vcmask 64512
        %v544 = vsel %vm542, %v536, 0
        %v547 = vsel %vm542, %v541, 0
        %549 = vmatpush.bf16.xpose.msra.mxu0 0
        %550 = vmatpush.bf16.xpose.msra.mxu0 0
        %551 = vmatpush.bf16.xpose.msra.mxu0 0
        %552 = vmatpush.bf16.xpose.msra.mxu0 0
        %553 = vmatpush.bf16.xpose.msra.mxu0 0
        %554 = vmatpush.bf16.xpose.msra.mxu0 0
        %555 = vmatpush.bf16.xpose.msra.mxu0 0
        %556 = vmatpush.bf16.xpose.msra.mxu0 %v547
        %557 = vmatmul.bf16.gmra.mxu0 %v544
        %v558 = vpop.f32.mrf.mxu0
        %v559 = vadd.f32 0.0, %v558
        %v560 = vpop.f32.mrf.mxu0
        %561 = vdwg.mxu0
        %v562 = vmul.f32 %v559, 0.35355338
        %v563 = vld [vmem:[%s389] sm:$0xf]
        %v564 = vunpack.c.l.bf16 %v563
        %v565 = vadd.f32 %v562, %v564
        %v566 = vsel %vm542, %v565, -inf
        %567 = vmax.xlane.f32.xlu0 %v566
        %v568 = vpop.xlane.xlu0 %567
        %v569 = vsub.f32 %v565, %v568
        %v570 = vmul.f32 %v569, 1.442695
        %v571 = vpow.pop %v570
        %v572 = vsel %vm542, %v571, 0.0
        %573 = vadd.xlane.f32.xlu0 %v572
        %v574 = vpop.xlane.xlu0 %573
        %v575 = vrcp.pop %v574
        %v576 = vmul.f32 %v571, %v575
        %v577 = vpack.c.bf16 %v576, %v576
        %578 = vrot.lane.b32.xlu0 %v539, 64
        %v579 = vpop.permute.xlu0 %578
        %v581 = vsel %vm542, %v577, 0
        %vm583 = vcmask 1043456
        %v585 = vsel %vm583, %v579, 0
        %587 = vmatpush.bf16.msra.mxu0 0
        %588 = vmatpush.bf16.msra.mxu0 0
        %589 = vmatpush.bf16.msra.mxu0 0
        %590 = vmatpush.bf16.msra.mxu0 0
        %591 = vmatpush.bf16.msra.mxu0 0
        %592 = vmatpush.bf16.msra.mxu0 0
        %593 = vmatpush.bf16.msra.mxu0 0
        %594 = vmatpush.bf16.msra.mxu0 %v585
        %595 = vmatmul.bf16.gmra.mxu0 %v581
        %v596 = vpop.f32.mrf.mxu0
        %v597 = vadd.f32 0.0, %v596
        %v598 = vpop.f32.mrf.mxu0
        %599 = vdwg.mxu0
        %v600 = vpack.c.bf16 %v597, %v597
        %vm601 = vcmask 60416
        %602 = vst.msk [vmem:[#allocation5] sm:$0xf] %vm601, %v600
        %v603 = vld [vmem:[#allocation4] sm:$0xf]
        %v605 = vunpack.c.l.b16 %v603
        %v606 = vpack.c.b16 %v605, %v605
        %607 = vrot.lane.b32.xlu0 %v606, 120
        %v608 = vpop.permute.xlu0 %607
        %609 = vrot.lane.b32.xlu0 %v606, 88
        %v610 = vpop.permute.xlu0 %609
        %v612 = vsel %vm542, %v608, 0
        %v615 = vsel %vm542, %v610, 0
        %617 = vmatpush.bf16.xpose.msra.mxu0 0
        %618 = vmatpush.bf16.xpose.msra.mxu0 0
        %619 = vmatpush.bf16.xpose.msra.mxu0 0
        %620 = vmatpush.bf16.xpose.msra.mxu0 0
        %621 = vmatpush.bf16.xpose.msra.mxu0 0
        %622 = vmatpush.bf16.xpose.msra.mxu0 0
        %623 = vmatpush.bf16.xpose.msra.mxu0 0
        %624 = vmatpush.bf16.xpose.msra.mxu0 %v615
        %625 = vmatmul.bf16.gmra.mxu0 %v612
        %v626 = vpop.f32.mrf.mxu0
        %v627 = vadd.f32 0.0, %v626
        %v628 = vpop.f32.mrf.mxu0
        %629 = vdwg.mxu0
        %v630 = vmul.f32 %v627, 0.35355338
        %s631 = scalar_lea.vmem %s389, 4 [#allocation9]
        %v632 = vld [vmem:[%s631] sm:$0xf]
        %v633 = vunpack.c.l.bf16 %v632
        %v634 = vadd.f32 %v630, %v633
        %v635 = vsel %vm542, %v634, -inf
        %636 = vmax.xlane.f32.xlu0 %v635
        %v637 = vpop.xlane.xlu0 %636
        %v638 = vsub.f32 %v634, %v637
        %v639 = vmul.f32 %v638, 1.442695
        %v640 = vpow.pop %v639
        %v641 = vsel %vm542, %v640, 0.0
        %642 = vadd.xlane.f32.xlu0 %v641
        %v643 = vpop.xlane.xlu0 %642
        %v644 = vrcp.pop %v643
        %v645 = vmul.f32 %v640, %v644
        %v646 = vpack.c.bf16 %v645, %v645
        %647 = vrot.lane.b32.xlu0 %v606, 56
        %v648 = vpop.permute.xlu0 %647
        %v650 = vsel %vm542, %v646, 0
        %v653 = vsel %vm583, %v648, 0
        %655 = vmatpush.bf16.msra.mxu0 0
        %656 = vmatpush.bf16.msra.mxu0 0
        %657 = vmatpush.bf16.msra.mxu0 0
        %658 = vmatpush.bf16.msra.mxu0 0
        %659 = vmatpush.bf16.msra.mxu0 0
        %660 = vmatpush.bf16.msra.mxu0 0
        %661 = vmatpush.bf16.msra.mxu0 0
        %662 = vmatpush.bf16.msra.mxu0 %v653
        %663 = vmatmul.bf16.gmra.mxu0 %v650
        %v664 = vpop.f32.mrf.mxu0
        %v665 = vadd.f32 0.0, %v664
        %v666 = vpop.f32.mrf.mxu0
        %667 = vdwg.mxu0
        %v668 = vpack.c.bf16 %v665, %v665
        %670 = vrot.lane.b32.xlu0 %v668, 8
        %v671 = vpop.permute.xlu0 %670
        %vm673 = vcmask 126016
        %674 = vst.msk [vmem:[#allocation5] sm:$0xf] %vm673, %v671
        %v675 = vld [vmem:[#allocation4] sm:$0xf]
        %v677 = vunpack.c.l.b16 %v675
        %v678 = vpack.c.b16 %v677, %v677
        %679 = vrot.lane.b32.xlu0 %v678, 112
        %v680 = vpop.permute.xlu0 %679
        %681 = vrot.lane.b32.xlu0 %v678, 80
        %v682 = vpop.permute.xlu0 %681
        %v684 = vsel %vm542, %v680, 0
        %v687 = vsel %vm542, %v682, 0
        %689 = vmatpush.bf16.xpose.msra.mxu0 0
        %690 = vmatpush.bf16.xpose.msra.mxu0 0
        %691 = vmatpush.bf16.xpose.msra.mxu0 0
        %692 = vmatpush.bf16.xpose.msra.mxu0 0
        %693 = vmatpush.bf16.xpose.msra.mxu0 0
        %694 = vmatpush.bf16.xpose.msra.mxu0 0
        %695 = vmatpush.bf16.xpose.msra.mxu0 0
        %696 = vmatpush.bf16.xpose.msra.mxu0 %v687
        %697 = vmatmul.bf16.gmra.mxu0 %v684
        %v698 = vpop.f32.mrf.mxu0
        %v699 = vadd.f32 0.0, %v698
        %v700 = vpop.f32.mrf.mxu0
        %701 = vdwg.mxu0
        %v702 = vmul.f32 %v699, 0.35355338
        %s703 = scalar_lea.vmem %s389, 8 [#allocation9]
        %v704 = vld [vmem:[%s703] sm:$0xf]
        %v705 = vunpack.c.l.bf16 %v704
        %v706 = vadd.f32 %v702, %v705
        %v707 = vsel %vm542, %v706, -inf
        %708 = vmax.xlane.f32.xlu0 %v707
        %v709 = vpop.xlane.xlu0 %708
        %v710 = vsub.f32 %v706, %v709
        %v711 = vmul.f32 %v710, 1.442695
        %v712 = vpow.pop %v711
        %v713 = vsel %vm542, %v712, 0.0
        %714 = vadd.xlane.f32.xlu0 %v713
        %v715 = vpop.xlane.xlu0 %714
        %v716 = vrcp.pop %v715
        %v717 = vmul.f32 %v712, %v716
        %v718 = vpack.c.bf16 %v717, %v717
        %719 = vrot.lane.b32.xlu0 %v678, 48
        %v720 = vpop.permute.xlu0 %719
        %v722 = vsel %vm542, %v718, 0
        %v725 = vsel %vm583, %v720, 0
        %727 = vmatpush.bf16.msra.mxu0 0
        %728 = vmatpush.bf16.msra.mxu0 0
        %729 = vmatpush.bf16.msra.mxu0 0
        %730 = vmatpush.bf16.msra.mxu0 0
        %731 = vmatpush.bf16.msra.mxu0 0
        %732 = vmatpush.bf16.msra.mxu0 0
        %733 = vmatpush.bf16.msra.mxu0 0
        %734 = vmatpush.bf16.msra.mxu0 %v725
        %735 = vmatmul.bf16.gmra.mxu0 %v722
        %v736 = vpop.f32.mrf.mxu0
        %v737 = vadd.f32 0.0, %v736
        %v738 = vpop.f32.mrf.mxu0
        %739 = vdwg.mxu0
        %v740 = vpack.c.bf16 %v737, %v737
        %742 = vrot.lane.b32.xlu0 %v740, 16
        %v743 = vpop.permute.xlu0 %742
        %vm745 = vcmask 191616
        %746 = vst.msk [vmem:[#allocation5] sm:$0xf] %vm745, %v743
        %v747 = vld [vmem:[#allocation4] sm:$0xf]
        %v749 = vunpack.c.l.b16 %v747
        %v750 = vpack.c.b16 %v749, %v749
        %751 = vrot.lane.b32.xlu0 %v750, 104
        %v752 = vpop.permute.xlu0 %751
        %753 = vrot.lane.b32.xlu0 %v750, 72
        %v754 = vpop.permute.xlu0 %753
        %v756 = vsel %vm542, %v752, 0
        %v759 = vsel %vm542, %v754, 0
        %761 = vmatpush.bf16.xpose.msra.mxu0 0
        %762 = vmatpush.bf16.xpose.msra.mxu0 0
        %763 = vmatpush.bf16.xpose.msra.mxu0 0
        %764 = vmatpush.bf16.xpose.msra.mxu0 0
        %765 = vmatpush.bf16.xpose.msra.mxu0 0
        %766 = vmatpush.bf16.xpose.msra.mxu0 0
        %767 = vmatpush.bf16.xpose.msra.mxu0 0
        %768 = vmatpush.bf16.xpose.msra.mxu0 %v759
        %769 = vmatmul.bf16.gmra.mxu0 %v756
        %v770 = vpop.f32.mrf.mxu0
        %v771 = vadd.f32 0.0, %v770
        %v772 = vpop.f32.mrf.mxu0
        %773 = vdwg.mxu0
        %v774 = vmul.f32 %v771, 0.35355338
        %s775 = scalar_lea.vmem %s389, 12 [#allocation9]
        %v776 = vld [vmem:[%s775] sm:$0xf]
        %v777 = vunpack.c.l.bf16 %v776
        %v778 = vadd.f32 %v774, %v777
        %v779 = vsel %vm542, %v778, -inf
        %780 = vmax.xlane.f32.xlu0 %v779
        %v781 = vpop.xlane.xlu0 %780
        %v782 = vsub.f32 %v778, %v781
        %v783 = vmul.f32 %v782, 1.442695
        %v784 = vpow.pop %v783
        %v785 = vsel %vm542, %v784, 0.0
        %786 = vadd.xlane.f32.xlu0 %v785
        %v787 = vpop.xlane.xlu0 %786
        %v788 = vrcp.pop %v787
        %v789 = vmul.f32 %v784, %v788
        %v790 = vpack.c.bf16 %v789, %v789
        %791 = vrot.lane.b32.xlu0 %v750, 40
        %v792 = vpop.permute.xlu0 %791
        %v794 = vsel %vm542, %v790, 0
        %v797 = vsel %vm583, %v792, 0
        %799 = vmatpush.bf16.msra.mxu0 0
        %800 = vmatpush.bf16.msra.mxu0 0
        %801 = vmatpush.bf16.msra.mxu0 0
        %802 = vmatpush.bf16.msra.mxu0 0
        %803 = vmatpush.bf16.msra.mxu0 0
        %804 = vmatpush.bf16.msra.mxu0 0
        %805 = vmatpush.bf16.msra.mxu0 0
        %806 = vmatpush.bf16.msra.mxu0 %v797
        %807 = vmatmul.bf16.gmra.mxu0 %v794
        %v808 = vpop.f32.mrf.mxu0
        %v809 = vadd.f32 0.0, %v808
        %v810 = vpop.f32.mrf.mxu0
        %811 = vdwg.mxu0
        %v812 = vpack.c.bf16 %v809, %v809
        %814 = vrot.lane.b32.xlu0 %v812, 24
        %v815 = vpop.permute.xlu0 %814
        %vm817 = vcmask 257216
        %818 = vst.msk [vmem:[#allocation5] sm:$0xf] %vm817, %v815
        %v819 = vld [vmem:[#allocation3] sm:$0xff]
        %v820 = vld [vmem:[#allocation5] sm:$0xf]
        %v821 = vld [vmem:[#allocation12] sm:$0xf]
        %v822 = vld [vmem:[#allocation12 + $0x4] sm:$0xf]
        %v823 = vld [vmem:[#allocation12 + $0x8] sm:$0xf]
        %v824 = vld [vmem:[#allocation12 + $0xc] sm:$0xf]
        %v829 = vunpack.c.l.b16 %v821
        %v830 = vunpack.c.l.b16 %v822
        %v831 = vunpack.c.l.b16 %v823
        %v832 = vunpack.c.l.b16 %v824
        %v833 = vpack.c.b16 %v830, %v829
        %v834 = vpack.c.b16 %v832, %v831
        %v838 = vsel %vm516, %v820, 0
        %840 = vmatpush.bf16.msra.mxu0 0
        %841 = vmatpush.bf16.msra.mxu0 0
        %842 = vmatpush.bf16.msra.mxu0 0
        %843 = vmatpush.bf16.msra.mxu0 0
        %844 = vmatpush.bf16.msra.mxu0 0
        %845 = vmatpush.bf16.msra.mxu0 0
        %846 = vmatpush.bf16.msra.mxu0 %v834
        %847 = vmatpush.bf16.msra.mxu0 %v833
        %848 = vmatmul.bf16.gmra.mxu0 %v838
        %v849 = vpop.f32.mrf.mxu0
        %v850 = vadd.f32 0.0, %v849
        %v851 = vpop.f32.mrf.mxu0
        %852 = vdwg.mxu0
        %v853 = vadd.f32 %v819, %v850
        %854 = vst.msk [vmem:[#allocation3] sm:$0xff] %vm516, %v853
        // Predicated region
        $region73: #{tpu_custom_call.1} parent=51 // pred_check
          %p855 = pneg %p446
        $region74: #{tpu_custom_call.1} parent=51 // pred_check_branch
          %857 = sbr.rel (%p855) target = $region76
        $region75: #{tpu_custom_call.1} parent=51 // pred_region
          %v858 = vld [vmem:[%s379] sm:$0xff]
          %v859 = vld [vmem:[#allocation3] sm:$0xff]
          %v860 = vadd.f32 %v858, %v859
          %v861 = vld [vmem:[%s7] sm:$0x1]
          %v863 = vperm.slane %v861, 0
          %v865 = vadd.f32 %v860, %v863
          %866 = vst.msk [vmem:[%s440] sm:$0xff] %vm516, %v865
        $region76: #{tpu_custom_call.1} parent=51 // pred_fallthru
          _
        %s867 = sand.u32 %s244, 1
        %s868 = scalar_lea.sflag [#allocation8], %s867
        %s869 = sand.u32 %s244, 1
        %s870 = smul.addr %s869, 8
        %s871 = scalar_lea.vmem [#allocation14], %s870
        // Predicated region
        $region77: #{tpu_custom_call.1} parent=51 // pred_check
          %p872 = pneg %p254
        $region78: #{tpu_custom_call.1} parent=51 // pred_check_branch
          %874 = sbr.rel (%p872) target = $region80
        $region79: #{tpu_custom_call.1} parent=51 // pred_region
          %876 = vsyncadd %s868, 0
          %s877 = smul.addr %s33, 8
          %s878 = scalar_lea.hbm %s8, %s877
          %s880 = sshll.u32 %s871, 4
          %s881 = int_to_ptr.vmem [resolvable:$true] %s880
          %s882 = sshll.u32 %s878, 4
          %s883 = int_to_ptr.hbm [resolvable:$true] %s882
          %885 = dma.vmem_to_hbm [thread:$0]  %s881, 128, %s883, %s868
        $region80: #{tpu_custom_call.1} parent=51 // pred_fallthru
          _
      $region52: #{tpu_custom_call.1} parent=5 // pred_fallthru
        _
      %p886 = scmp.le.s32.totalorder 2, %s24
      // Predicated region
      $region81: #{tpu_custom_call.1} parent=5 // pred_check
        %p887 = pneg %p886
      $region82: #{tpu_custom_call.1} parent=5 // pred_check_branch
        %889 = sbr.rel (%p887) target = $region84
      $region83: #{tpu_custom_call.1} parent=5 // pred_region
        %s890 = ssub.s32 %s24, 2
        // Predicated region
        $region85: #{tpu_custom_call.1} parent=83 // pred_check
          %p891 = pneg %p260
        $region86: #{tpu_custom_call.1} parent=83 // pred_check_branch
          %893 = sbr.rel (%p891) target = $region88
        $region87: #{tpu_custom_call.1} parent=83 // pred_region
          %s894 = sand.u32 %s245, 1
          %s895 = scalar_lea.sflag [#allocation8], %s894
          %s896 = sand.u32 %s245, 1
          %s897 = smul.addr %s896, 8
          %s898 = scalar_lea.vmem [#allocation14], %s897
          %900 = dma.done %s895, 128
        $region88: #{tpu_custom_call.1} parent=83 // pred_fallthru
          _
      $region84: #{tpu_custom_call.1} parent=5 // pred_fallthru
        _
    $region6: #{tpu_custom_call.1} parent=1 // loop_footer
      %s28 = sadd.s32 1, %s24
    $region7: #{tpu_custom_call.1} parent=1 // loop_footer_branch
      %23 = sbr.rel target = $region3
    $region8: #{tpu_custom_call.1} parent=1 // loop_exit
      _
    %901 = vsyncpa [#allocation7], 1
    %s902 = scalar_lea.sflag [#allocation7], 1
    %903 = vsyncpa %s902, 1
    %904 = vsyncpa [#allocation10], 1
    %s905 = scalar_lea.sflag [#allocation10], 1
    %906 = vsyncpa %s905, 1
    %907 = vsyncpa [#allocation13], 1
    %908 = vsyncpa [#allocation8], 1
    %s909 = scalar_lea.sflag [#allocation8], 1
    %910 = vsyncpa %s909, 1

// kernel: tpu_custom_call.1
$region0: #{tpu_custom_call.1}
  #allocation0 [shape = 'u32[]', space=smem, size = 0x4, offset = 0x4, fixed_abs, tag = 'smem constant byte address 0x4 - core index']
  #allocation1 [shape = 'u32[72,128]{1,0:T(1,128)}', space=vmem, size = 0x9000, scoped, tag = 'internal scratch']
  #allocation2 [shape = 'bf16[8,32]{1,0:T(8,128)(2,1)}', space=vmem, size = 0x800, scoped, tag = 'scratch operand']
  #allocation3 [shape = 'f32[8,32]{1,0:T(8,128)}', space=vmem, size = 0x1000, scoped, tag = 'scratch operand']
  #allocation4 [shape = 'bf16[8,96]{1,0:T(8,128)(2,1)}', space=vmem, size = 0x800, scoped, tag = 'scratch operand']
  #allocation5 [shape = 'bf16[8,32]{1,0:T(8,128)(2,1)}', space=vmem, size = 0x800, scoped, tag = 'scratch operand']
  %s0 = inlined_call_operand.hbm [shape: f32[2,8,32], index: 0, kind: input, shape index: {}]
  %s1 = inlined_call_operand.hbm [shape: bf16[2,4,8,8], index: 1, kind: input, shape index: {}]
  %s2 = inlined_call_operand.vmem [shape: f32[1,32], index: 2, kind: input, shape index: {}]
  %s3 = inlined_call_operand.vmem [shape: f32[1,32], index: 3, kind: input, shape index: {}]
  %s4 = inlined_call_operand.hbm [shape: bf16[1,32,96], index: 4, kind: input, shape index: {}]
  %s5 = inlined_call_operand.vmem [shape: f32[1,1,96], index: 5, kind: input, shape index: {}]
  %s6 = inlined_call_operand.hbm [shape: bf16[1,32,32], index: 6, kind: input, shape index: {}]
  %s7 = inlined_call_operand.vmem [shape: f32[1,32], index: 7, kind: input, shape index: {}]
  %s8 = inlined_call_operand.hbm [shape: f32[2,8,32], index: 8, kind: output, shape index: {}]
  %s9 = sld [smem:[#allocation0]]
  $region89: #{tpu_custom_call.1} parent=0
    _
  %s11 = ssub.s32 1, %s9
  %s12 = scalar_select 0, %s11, %s9
  $region1: #{tpu_custom_call.1} parent=0
    #allocation6 [shape = 'u8[8192]{0}', space=vmem, size = 0x2000, scoped, tag = 'input window, operand 0']
    #allocation7 [shape = 's32[2]{0}', space=sflag, size = 0x8, scoped, tag = 'scoped memory for tpu_custom_call.1']
    #allocation8 [shape = 's32[2]{0}', space=sflag, size = 0x8, scoped, tag = 'scoped memory for tpu_custom_call.1']
    #allocation9 [shape = 'u8[16384]{0}', space=vmem, size = 0x4000, scoped, tag = 'input window, operand 1']
    #allocation10 [shape = 's32[2]{0}', space=sflag, size = 0x8, scoped, tag = 'scoped memory for tpu_custom_call.1']
    #allocation11 [shape = 'u8[8192]{0}', space=vmem, size = 0x2000, scoped, tag = 'input window, operand 4, single buffered']
    #allocation12 [shape = 'u8[8192]{0}', space=vmem, size = 0x2000, scoped, tag = 'input window, operand 6, single buffered']
    #allocation13 [shape = 's32[1]{0}', space=sflag, size = 0x4, scoped, tag = 'scoped memory for tpu_custom_call.1']
    #allocation14 [shape = 'u8[8192]{0}', space=vmem, size = 0x2000, scoped, tag = 'output window, operand 0']
    %13 = vsyncpa [#allocation7], 0
    %s14 = scalar_lea.sflag [#allocation7], 1
    %15 = vsyncpa %s14, 0
    %16 = vsyncpa [#allocation10], 0
    %s17 = scalar_lea.sflag [#allocation10], 1
    %18 = vsyncpa %s17, 0
    %19 = vsyncpa [#allocation13], 0
    %20 = vsyncpa [#allocation8], 0
    %s21 = scalar_lea.sflag [#allocation8], 1
    %22 = vsyncpa %s21, 0
    loop: start=0, step=1, limit=4
    $region2: #{tpu_custom_call.1} parent=1 // loop_pre_header
      _
    $region3: #{tpu_custom_call.1} parent=1 // loop_header
      %s24 = sphi 0, %s28
      %p25 = scmp.ge.s32.totalorder %s24, 4
      %s31 = sphi 0, %s43
      %s32 = sphi 0, %s39
      %s33 = sphi 0, %s31
      %s34 = sphi 0, %s32
      %s35 = sphi 0, %s33
      %s36 = sphi 0, %s34
      %s46 = sphi 0, %s48
      %s49 = sphi 0, %s46
      %s50 = sphi 0, %s49
      %s66 = sphi 0, %s50
      %s74 = sphi 0, %s76
      %s77 = sphi 0, %s74
      %s78 = sphi 0, %s77
      %s94 = sphi 0, %s78
      %s98 = sphi 0, %s98
      %s100 = sphi 0, %s98
      %s101 = sphi 0, %s100
      %s115 = sphi 0, %s101
      %s119 = sphi 0, %s119
      %s121 = sphi 0, %s119
      %s122 = sphi 0, %s121
      %s136 = sphi 0, %s122
      %s142 = sphi 0, %s144
      %s145 = sphi 0, %s142
      %s146 = sphi 0, %s145
      %s162 = sphi 0, %s146
      %s168 = sphi 0, %s170
      %s171 = sphi 0, %s168
      %s172 = sphi 0, %s171
      %s188 = sphi 0, %s172
      %s194 = sphi 0, %s196
      %s197 = sphi 0, %s194
      %s198 = sphi 0, %s197
      %s214 = sphi 0, %s198
      %s218 = sphi 0, %s218
      %s220 = sphi 0, %s218
      %s221 = sphi 0, %s220
      %s235 = sphi 0, %s221
      %s241 = sphi 0, %s243
      %s244 = sphi 0, %s241
      %s245 = sphi 0, %s244
      %s261 = sphi 0, %s245
    $region4: #{tpu_custom_call.1} parent=1 // loop_header_branch
      %27 = sbr.rel (%p25) target = $region8
    $region5: #{tpu_custom_call.1} parent=1 // loop_body
      %s29 = ssub.s32 %s24, 1
      %s30 = ssub.s32 %s24, 2
      %s37 = sadd.s32 1, %s32
      %p38 = scmp.ge.s32.totalorder %s37, 1
      %s39 = scalar_select %p38, 0, %s37
      %s40 = sadd.s32 1, %s31
      %s41 = scalar_select %p38, %s40, %s31
      %p42 = scmp.ge.s32.totalorder %s41, 2
      %s43 = scalar_select %p42, 0, %s41
      %s44 = ssub.s32 %s31, %s43
      %p45 = scmp.eq.s32.totalorder %s44, 0
      %s47 = sadd.s32 %s46, 1
      %s48 = scalar_select %p45, %s46, %s47
      %p51 = pneg %p45
      %p52 = scmp.eq.s32.totalorder %s24, 1
      %p53 = por %p51, %p52
      %p54 = scmp.ne.s32.totalorder %s46, %s49
      %p55 = scmp.eq.s32.totalorder %s24, 0
      %p56 = por %p54, %p55
      %p57 = scmp.ne.s32.totalorder %s46, %s49
      %p58 = scmp.eq.s32.totalorder %s29, 1
      %p59 = por %p57, %p58
      %p60 = scmp.ne.s32.totalorder %s49, %s50
      %p61 = scmp.eq.s32.totalorder %s29, 0
      %p62 = por %p60, %p61
      %p63 = scmp.ne.s32.totalorder %s49, %s50
      %p64 = scmp.eq.s32.totalorder %s30, 1
      %p65 = por %p63, %p64
      %p67 = scmp.ne.s32.totalorder %s50, %s66
      %p68 = scmp.eq.s32.totalorder %s30, 0
      %p69 = por %p67, %p68
      %s70 = ssub.s32 %s31, %s43
      %s71 = ssub.s32 %s32, %s39
      %s72 = sor.u32 %s70, %s71
      %p73 = scmp.eq.s32.totalorder %s72, 0
      %s75 = sadd.s32 %s74, 1
      %s76 = scalar_select %p73, %s74, %s75
      %p79 = pneg %p73
      %p80 = scmp.eq.s32.totalorder %s24, 1
      %p81 = por %p79, %p80
      %p82 = scmp.ne.s32.totalorder %s74, %s77
      %p83 = scmp.eq.s32.totalorder %s24, 0
      %p84 = por %p82, %p83
      %p85 = scmp.ne.s32.totalorder %s74, %s77
      %p86 = scmp.eq.s32.totalorder %s29, 1
      %p87 = por %p85, %p86
      %p88 = scmp.ne.s32.totalorder %s77, %s78
      %p89 = scmp.eq.s32.totalorder %s29, 0
      %p90 = por %p88, %p89
      %p91 = scmp.ne.s32.totalorder %s77, %s78
      %p92 = scmp.eq.s32.totalorder %s30, 1
      %p93 = por %p91, %p92
      %p95 = scmp.ne.s32.totalorder %s78, %s94
      %p96 = scmp.eq.s32.totalorder %s30, 0
      %p97 = por %p95, %p96
      %s99 = sadd.s32 %s98, 1
      %p102 = scmp.eq.s32.totalorder %s24, 1
      %p103 = scmp.ne.s32.totalorder %s98, %s100
      %p104 = scmp.eq.s32.totalorder %s24, 0
      %p105 = por %p103, %p104
      %p106 = scmp.ne.s32.totalorder %s98, %s100
      %p107 = scmp.eq.s32.totalorder %s29, 1
      %p108 = por %p106, %p107
      %p109 = scmp.ne.s32.totalorder %s100, %s101
      %p110 = scmp.eq.s32.totalorder %s29, 0
      %p111 = por %p109, %p110
      %p112 = scmp.ne.s32.totalorder %s100, %s101
      %p113 = scmp.eq.s32.totalorder %s30, 1
      %p114 = por %p112, %p113
      %p116 = scmp.ne.s32.totalorder %s101, %s115
      %p117 = scmp.eq.s32.totalorder %s30, 0
      %p118 = por %p116, %p117
      %s120 = sadd.s32 %s119, 1
      %p123 = scmp.eq.s32.totalorder %s24, 1
      %p124 = scmp.ne.s32.totalorder %s119, %s121
      %p125 = scmp.eq.s32.totalorder %s24, 0
      %p126 = por %p124, %p125
      %p127 = scmp.ne.s32.totalorder %s119, %s121
      %p128 = scmp.eq.s32.totalorder %s29, 1
      %p129 = por %p127, %p128
      %p130 = scmp.ne.s32.totalorder %s121, %s122
      %p131 = scmp.eq.s32.totalorder %s29, 0
      %p132 = por %p130, %p131
      %p133 = scmp.ne.s32.totalorder %s121, %s122
      %p134 = scmp.eq.s32.totalorder %s30, 1
      %p135 = por %p133, %p134
      %p137 = scmp.ne.s32.totalorder %s122, %s136
      %p138 = scmp.eq.s32.totalorder %s30, 0
      %p139 = por %p137, %p138
      %s140 = ssub.s32 %s32, %s39
      %p141 = scmp.eq.s32.totalorder %s140, 0
      %s143 = sadd.s32 %s142, 1
      %s144 = scalar_select %p141, %s142, %s143
      %p147 = pneg %p141
      %p148 = scmp.eq.s32.totalorder %s24, 1
      %p149 = por %p147, %p148
      %p150 = scmp.ne.s32.totalorder %s142, %s145
      %p151 = scmp.eq.s32.totalorder %s24, 0
      %p152 = por %p150, %p151
      %p153 = scmp.ne.s32.totalorder %s142, %s145
      %p154 = scmp.eq.s32.totalorder %s29, 1
      %p155 = por %p153, %p154
      %p156 = scmp.ne.s32.totalorder %s145, %s146
      %p157 = scmp.eq.s32.totalorder %s29, 0
      %p158 = por %p156, %p157
      %p159 = scmp.ne.s32.totalorder %s145, %s146
      %p160 = scmp.eq.s32.totalorder %s30, 1
      %p161 = por %p159, %p160
      %p163 = scmp.ne.s32.totalorder %s146, %s162
      %p164 = scmp.eq.s32.totalorder %s30, 0
      %p165 = por %p163, %p164
      %s166 = ssub.s32 %s32, %s39
      %p167 = scmp.eq.s32.totalorder %s166, 0
      %s169 = sadd.s32 %s168, 1
      %s170 = scalar_select %p167, %s168, %s169
      %p173 = pneg %p167
      %p174 = scmp.eq.s32.totalorder %s24, 1
      %p175 = por %p173, %p174
      %p176 = scmp.ne.s32.totalorder %s168, %s171
      %p177 = scmp.eq.s32.totalorder %s24, 0
      %p178 = por %p176, %p177
      %p179 = scmp.ne.s32.totalorder %s168, %s171
      %p180 = scmp.eq.s32.totalorder %s29, 1
      %p181 = por %p179, %p180
      %p182 = scmp.ne.s32.totalorder %s171, %s172
      %p183 = scmp.eq.s32.totalorder %s29, 0
      %p184 = por %p182, %p183
      %p185 = scmp.ne.s32.totalorder %s171, %s172
      %p186 = scmp.eq.s32.totalorder %s30, 1
      %p187 = por %p185, %p186
      %p189 = scmp.ne.s32.totalorder %s172, %s188
      %p190 = scmp.eq.s32.totalorder %s30, 0
      %p191 = por %p189, %p190
      %s192 = ssub.s32 %s32, %s39
      %p193 = scmp.eq.s32.totalorder %s192, 0
      %s195 = sadd.s32 %s194, 1
      %s196 = scalar_select %p193, %s194, %s195
      %p199 = pneg %p193
      %p200 = scmp.eq.s32.totalorder %s24, 1
      %p201 = por %p199, %p200
      %p202 = scmp.ne.s32.totalorder %s194, %s197
      %p203 = scmp.eq.s32.totalorder %s24, 0
      %p204 = por %p202, %p203
      %p205 = scmp.ne.s32.totalorder %s194, %s197
      %p206 = scmp.eq.s32.totalorder %s29, 1
      %p207 = por %p205, %p206
      %p208 = scmp.ne.s32.totalorder %s197, %s198
      %p209 = scmp.eq.s32.totalorder %s29, 0
      %p210 = por %p208, %p209
      %p211 = scmp.ne.s32.totalorder %s197, %s198
      %p212 = scmp.eq.s32.totalorder %s30, 1
      %p213 = por %p211, %p212
      %p215 = scmp.ne.s32.totalorder %s198, %s214
      %p216 = scmp.eq.s32.totalorder %s30, 0
      %p217 = por %p215, %p216
      %s219 = sadd.s32 %s218, 1
      %p222 = scmp.eq.s32.totalorder %s24, 1
      %p223 = scmp.ne.s32.totalorder %s218, %s220
      %p224 = scmp.eq.s32.totalorder %s24, 0
      %p225 = por %p223, %p224
      %p226 = scmp.ne.s32.totalorder %s218, %s220
      %p227 = scmp.eq.s32.totalorder %s29, 1
      %p228 = por %p226, %p227
      %p229 = scmp.ne.s32.totalorder %s220, %s221
      %p230 = scmp.eq.s32.totalorder %s29, 0
      %p231 = por %p229, %p230
      %p232 = scmp.ne.s32.totalorder %s220, %s221
      %p233 = scmp.eq.s32.totalorder %s30, 1
      %p234 = por %p232, %p233
      %p236 = scmp.ne.s32.totalorder %s221, %s235
      %p237 = scmp.eq.s32.totalorder %s30, 0
      %p238 = por %p236, %p237
      %s239 = ssub.s32 %s31, %s43
      %p240 = scmp.eq.s32.totalorder %s239, 0
      %s242 = sadd.s32 %s241, 1
      %s243 = scalar_select %p240, %s241, %s242
      %p246 = pneg %p240
      %p247 = scmp.eq.s32.totalorder %s24, 1
      %p248 = por %p246, %p247
      %p249 = scmp.ne.s32.totalorder %s241, %s244
      %p250 = scmp.eq.s32.totalorder %s24, 0
      %p251 = por %p249, %p250
      %p252 = scmp.ne.s32.totalorder %s241, %s244
      %p253 = scmp.eq.s32.totalorder %s29, 1
      %p254 = por %p252, %p253
      %p255 = scmp.ne.s32.totalorder %s244, %s245
      %p256 = scmp.eq.s32.totalorder %s29, 0
      %p257 = por %p255, %p256
      %p258 = scmp.ne.s32.totalorder %s244, %s245
      %p259 = scmp.eq.s32.totalorder %s30, 1
      %p260 = por %p258, %p259
      %p262 = scmp.ne.s32.totalorder %s245, %s261
      %p263 = scmp.eq.s32.totalorder %s30, 0
      %p264 = por %p262, %p263
      %p265 = scmp.le.s32.totalorder 1, %s24
      %p266 = scmp.lt.s32.totalorder %s24, 3
      %p267 = pnand %p265, %p266
      %p268 = pneg %p267
      // Predicated region
      $region9: #{tpu_custom_call.1} parent=5 // pred_check
        _
      $region10: #{tpu_custom_call.1} parent=5 // pred_check_branch
        %270 = sbr.rel (%p267) target = $region12
      $region11: #{tpu_custom_call.1} parent=5 // pred_region
        %s271 = ssub.s32 %s24, 1
        // Predicated region
        $region13: #{tpu_custom_call.1} parent=11 // pred_check
          %p272 = pneg %p111
        $region14: #{tpu_custom_call.1} parent=11 // pred_check_branch
          %274 = sbr.rel (%p272) target = $region16
        $region15: #{tpu_custom_call.1} parent=11 // pred_region
          _
        $region16: #{tpu_custom_call.1} parent=11 // pred_fallthru
          _
        // Predicated region
        $region17: #{tpu_custom_call.1} parent=11 // pred_check
          %p275 = pneg %p132
        $region18: #{tpu_custom_call.1} parent=11 // pred_check_branch
          %277 = sbr.rel (%p275) target = $region20
        $region19: #{tpu_custom_call.1} parent=11 // pred_region
          _
        $region20: #{tpu_custom_call.1} parent=11 // pred_fallthru
          _
        // Predicated region
        $region21: #{tpu_custom_call.1} parent=11 // pred_check
          %p278 = pneg %p158
        $region22: #{tpu_custom_call.1} parent=11 // pred_check_branch
          %280 = sbr.rel (%p278) target = $region24
        $region23: #{tpu_custom_call.1} parent=11 // pred_region
          %282 = vsyncadd [#allocation10], 0
          %s283 = smul.addr %s34, 4
          %s284 = smul.addr %s283, 4
          %s285 = scalar_lea.hbm %s4, %s284
          %s286 = sshll.u32 %s285, 4
          %s287 = int_to_ptr.hbm [resolvable:$true] %s286
          %s288 = sshll.u32 [#allocation11], 4
          %s289 = int_to_ptr.vmem [resolvable:$true] %s288
          %294 = dma.hbm_to_vmem [thread:$0]  %s287, 256, %s289, [#allocation10], 64, 64, 4
        $region24: #{tpu_custom_call.1} parent=11 // pred_fallthru
          _
        // Predicated region
        $region25: #{tpu_custom_call.1} parent=11 // pred_check
          %p295 = pneg %p184
        $region26: #{tpu_custom_call.1} parent=11 // pred_check_branch
          %297 = sbr.rel (%p295) target = $region28
        $region27: #{tpu_custom_call.1} parent=11 // pred_region
          %p298 = scmp.lt.s32.totalorder %s34, 0
          %s299 = scalar_select %p298, %s34, 0
          %s300 = scalar_lea.vmem %s5, %s299
        $region28: #{tpu_custom_call.1} parent=11 // pred_fallthru
          _
        // Predicated region
        $region29: #{tpu_custom_call.1} parent=11 // pred_check
          %p301 = pneg %p210
        $region30: #{tpu_custom_call.1} parent=11 // pred_check_branch
          %303 = sbr.rel (%p301) target = $region32
        $region31: #{tpu_custom_call.1} parent=11 // pred_region
          %305 = vsyncadd [#allocation13], 0
          %s306 = smul.addr %s34, 4
          %s307 = smul.addr %s306, 4
          %s308 = scalar_lea.hbm %s6, %s307
          %s309 = sshll.u32 %s308, 4
          %s310 = int_to_ptr.hbm [resolvable:$true] %s309
          %s311 = sshll.u32 [#allocation12], 4
          %s312 = int_to_ptr.vmem [resolvable:$true] %s311
          %317 = dma.hbm_to_vmem [thread:$0]  %s310, 256, %s312, [#allocation13], 64, 64, 4
        $region32: #{tpu_custom_call.1} parent=11 // pred_fallthru
          _
        // Predicated region
        $region33: #{tpu_custom_call.1} parent=11 // pred_check
          %p318 = pneg %p231
        $region34: #{tpu_custom_call.1} parent=11 // pred_check_branch
          %320 = sbr.rel (%p318) target = $region36
        $region35: #{tpu_custom_call.1} parent=11 // pred_region
          _
        $region36: #{tpu_custom_call.1} parent=11 // pred_fallthru
          _
      $region12: #{tpu_custom_call.1} parent=5 // pred_fallthru
        _
      %p321 = scmp.lt.s32.totalorder %s24, 2
      // Predicated region
      $region37: #{tpu_custom_call.1} parent=5 // pred_check
        %p322 = pneg %p321
      $region38: #{tpu_custom_call.1} parent=5 // pred_check_branch
        %324 = sbr.rel (%p322) target = $region40
      $region39: #{tpu_custom_call.1} parent=5 // pred_region
        // Predicated region
        $region41: #{tpu_custom_call.1} parent=39 // pred_check
          %p325 = pneg %p56
        $region42: #{tpu_custom_call.1} parent=39 // pred_check_branch
          %327 = sbr.rel (%p325) target = $region44
        $region43: #{tpu_custom_call.1} parent=39 // pred_region
          %s328 = sand.u32 %s46, 1
          %s329 = scalar_lea.sflag [#allocation7], %s328
          %s330 = sand.u32 %s46, 1
          %s331 = smul.addr %s330, 8
          %s332 = scalar_lea.vmem [#allocation6], %s331
          %334 = vsyncadd %s329, 0
          %s335 = smul.addr %s31, 8
          %s336 = scalar_lea.hbm %s0, %s335
          %s338 = sshll.u32 %s336, 4
          %s339 = int_to_ptr.hbm [resolvable:$true] %s338
          %s340 = sshll.u32 %s332, 4
          %s341 = int_to_ptr.vmem [resolvable:$true] %s340
          %343 = dma.hbm_to_vmem [thread:$0]  %s339, 128, %s341, %s329
        $region44: #{tpu_custom_call.1} parent=39 // pred_fallthru
          _
        // Predicated region
        $region45: #{tpu_custom_call.1} parent=39 // pred_check
          %p344 = pneg %p84
        $region46: #{tpu_custom_call.1} parent=39 // pred_check_branch
          %346 = sbr.rel (%p344) target = $region48
        $region47: #{tpu_custom_call.1} parent=39 // pred_region
          %s347 = sand.u32 %s24, 1
          %s348 = scalar_lea.sflag [#allocation10], %s347
          %s349 = sand.u32 %s74, 1
          %s350 = smul.addr %s349, 16
          %s351 = scalar_lea.vmem [#allocation9], %s350
          %s352 = smul.u32 4, %s32
          %354 = vsyncadd %s348, 0
          %s355 = smul.addr %s31, 4
          %s356 = sadd.s32 %s352, %s355
          %s357 = smul.addr %s356, 4
          %s358 = scalar_lea.hbm %s1, %s357
          %s359 = sshll.u32 %s358, 4
          %s360 = int_to_ptr.hbm [resolvable:$true] %s359
          %s361 = sshll.u32 %s351, 4
          %s362 = int_to_ptr.vmem [resolvable:$true] %s361
          %367 = dma.hbm_to_vmem [thread:$0]  %s360, 256, %s362, %s348, 64, 64, 4
        $region48: #{tpu_custom_call.1} parent=39 // pred_fallthru
          _
      $region40: #{tpu_custom_call.1} parent=5 // pred_fallthru
        _
      %p368 = scmp.le.s32.totalorder 1, %s24
      %p369 = scmp.lt.s32.totalorder %s24, 3
      %p370 = pnand %p368, %p369
      %p371 = pneg %p370
      // Predicated region
      $region49: #{tpu_custom_call.1} parent=5 // pred_check
        _
      $region50: #{tpu_custom_call.1} parent=5 // pred_check_branch
        %373 = sbr.rel (%p370) target = $region52
      $region51: #{tpu_custom_call.1} parent=5 // pred_region
        %s374 = ssub.s32 %s24, 1
        %s375 = sand.u32 %s49, 1
        %s376 = scalar_lea.sflag [#allocation7], %s375
        %s377 = sand.u32 %s49, 1
        %s378 = smul.addr %s377, 8
        %s379 = scalar_lea.vmem [#allocation6], %s378
        // Predicated region
        $region53: #{tpu_custom_call.1} parent=51 // pred_check
          %p380 = pneg %p62
        $region54: #{tpu_custom_call.1} parent=51 // pred_check_branch
          %382 = sbr.rel (%p380) target = $region56
        $region55: #{tpu_custom_call.1} parent=51 // pred_region
          %384 = dma.done %s376, 128
        $region56: #{tpu_custom_call.1} parent=51 // pred_fallthru
          _
        %s385 = sand.u32 %s29, 1
        %s386 = scalar_lea.sflag [#allocation10], %s385
        %s387 = sand.u32 %s77, 1
        %s388 = smul.addr %s387, 16
        %s389 = scalar_lea.vmem [#allocation9], %s388
        // Predicated region
        $region57: #{tpu_custom_call.1} parent=51 // pred_check
          %p390 = pneg %p90
        $region58: #{tpu_custom_call.1} parent=51 // pred_check_branch
          %392 = sbr.rel (%p390) target = $region60
        $region59: #{tpu_custom_call.1} parent=51 // pred_region
          %394 = dma.done %s386, 256
        $region60: #{tpu_custom_call.1} parent=51 // pred_fallthru
          _
        // Predicated region
        $region61: #{tpu_custom_call.1} parent=51 // pred_check
          %p395 = pneg %p158
        $region62: #{tpu_custom_call.1} parent=51 // pred_check_branch
          %397 = sbr.rel (%p395) target = $region64
        $region63: #{tpu_custom_call.1} parent=51 // pred_region
          %399 = dma.done [#allocation10], 256
        $region64: #{tpu_custom_call.1} parent=51 // pred_fallthru
          _
        // Predicated region
        $region65: #{tpu_custom_call.1} parent=51 // pred_check
          %p400 = pneg %p210
        $region66: #{tpu_custom_call.1} parent=51 // pred_check_branch
          %402 = sbr.rel (%p400) target = $region68
        $region67: #{tpu_custom_call.1} parent=51 // pred_region
          %404 = dma.done [#allocation13], 256
        $region68: #{tpu_custom_call.1} parent=51 // pred_fallthru
          _
        %s405 = sand.u32 %s49, 1
        %s406 = scalar_lea.sflag [#allocation7], %s405
        %s407 = sand.u32 %s49, 1
        %s408 = smul.addr %s407, 8
        %s409 = scalar_lea.vmem [#allocation6], %s408
        %p410 = pneg %p62
        %p411 = pneg %p59
        %s412 = sand.u32 %s29, 1
        %s413 = scalar_lea.sflag [#allocation10], %s412
        %s414 = sand.u32 %s77, 1
        %s415 = smul.addr %s414, 16
        %s416 = scalar_lea.vmem [#allocation9], %s415
        %p417 = pneg %p90
        %p418 = pneg %p87
        %p419 = pneg %p111
        %p420 = pneg %p108
        %p421 = pneg %p132
        %p422 = pneg %p129
        %p423 = pneg %p158
        %p424 = pneg %p155
        %p425 = scmp.lt.s32.totalorder %s34, 0
        %s426 = scalar_select %p425, %s34, 0
        %s427 = scalar_lea.vmem %s5, %s426
        %p428 = pneg %p184
        %p429 = pneg %p181
        %p430 = pneg %p210
        %p431 = pneg %p207
        %p432 = pneg %p231
        %p433 = pneg %p228
        %p434 = pneg %p257
        %p435 = pneg %p254
        %s436 = sand.u32 %s244, 1
        %s437 = scalar_lea.sflag [#allocation8], %s436
        %s438 = sand.u32 %s244, 1
        %s439 = smul.addr %s438, 8
        %s440 = scalar_lea.vmem [#allocation14], %s439
        %s441 = smul.u32 4, %s34
        %p442 = scmp.lt.s32.totalorder %s34, 0
        %s443 = scalar_select %p442, %s34, 0
        %s444 = scalar_lea.vmem %s5, %s443
        %p446 = scmp.eq.s32.totalorder %s34, 0
        // Predicated region
        $region69: #{tpu_custom_call.1} parent=51 // pred_check
          %p447 = pneg %p446
        $region70: #{tpu_custom_call.1} parent=51 // pred_check_branch
          %449 = sbr.rel (%p447) target = $region72
        $region71: #{tpu_custom_call.1} parent=51 // pred_region
          %v450 = vld [vmem:[%s379] sm:$0xff]
          %v451 = vld [vmem:[%s2] sm:$0x1]
          %v452 = vld [vmem:[%s3] sm:$0x1]
          %vm453 = vcmask 261120
          %v454 = vsel %vm453, %v450, 0.0
          %455 = vadd.xlane.f32.xlu0 %v454
          %v456 = vpop.xlane.xlu0 %455
          %v457 = vrcp.pop 32.0
          %v458 = vmul.f32 32.0, %v457
          %v459 = vsub.f32 1.0, %v458
          %v460 = vmul.f32 %v457, %v459
          %v461 = vadd.f32 %v457, %v460
          %vm462 = vweird.f32 %v457
          %v463 = vsel %vm462, %v457, %v461
          %v464 = vmul.f32 %v456, %v463
          %v465 = vsub.f32 %v450, %v464
          %v466 = vmul.f32 %v465, %v465
          %v467 = vsel %vm453, %v466, 0.0
          %468 = vadd.xlane.f32.xlu0 %v467
          %v469 = vpop.xlane.xlu0 %468
          %v470 = vmul.f32 %v469, %v463
          %v471 = vadd.f32 %v470, 1e-05
          %v472 = vrsqrt.pop %v471
          %v473 = vmul.f32 %v472, %v471
          %v474 = vmul.f32 %v473, %v472
          %v475 = vmul.f32 0.5, %v474
          %v476 = vsub.f32 1.5, %v475
          %v477 = vmul.f32 %v472, %v476
          %vm478 = vweird.f32 %v471
          %vm479 = vweird.f32 %v472
          %vm480 = vmor %vm478, %vm479
          %v481 = vsel %vm480, %v472, %v477
          %v482 = vmul.f32 %v465, %v481
          %v484 = vperm.slane %v451, 0
          %v486 = vmul.f32 %v482, %v484
          %v488 = vperm.slane %v452, 0
          %v490 = vadd.f32 %v486, %v488
          %v491 = vpack.c.bf16 %v490, %v490
          %vm492 = vcmask 257024
          %493 = vst.msk [vmem:[#allocation2] sm:$0xf] %vm492, %v491
          %494 = vst.msk [vmem:[#allocation3] sm:$0xff] %vm453, 0.0
        $region72: #{tpu_custom_call.1} parent=51 // pred_fallthru
          _
        %v495 = vld [vmem:[#allocation2] sm:$0xf]
        %v496 = vld [vmem:[#allocation11] sm:$0xf]
        %v497 = vld [vmem:[#allocation11 + $0x4] sm:$0xf]
        %v498 = vld [vmem:[#allocation11 + $0x8] sm:$0xf]
        %v499 = vld [vmem:[#allocation11 + $0xc] sm:$0xf]
        %v500 = vld [vmem:[%s444] sm:$0x1]
        %v502 = vperm.slane %v500, 0
        %v508 = vunpack.c.l.b16 %v496
        %v509 = vunpack.c.l.b16 %v497
        %v510 = vunpack.c.l.b16 %v498
        %v511 = vunpack.c.l.b16 %v499
        %v512 = vpack.c.b16 %v509, %v508
        %v513 = vpack.c.b16 %v511, %v510
        %vm516 = vcmask 261120
        %v518 = vsel %vm516, %v495, 0
        %520 = vmatpush.bf16.msra.mxu0 0
        %521 = vmatpush.bf16.msra.mxu0 0
        %522 = vmatpush.bf16.msra.mxu0 0
        %523 = vmatpush.bf16.msra.mxu0 0
        %524 = vmatpush.bf16.msra.mxu0 0
        %525 = vmatpush.bf16.msra.mxu0 0
        %526 = vmatpush.bf16.msra.mxu0 %v513
        %527 = vmatpush.bf16.msra.mxu0 %v512
        %528 = vmatmul.bf16.gmra.mxu0 %v518
        %v529 = vpop.f32.mrf.mxu0
        %v530 = vadd.f32 %v502, %v529
        %v531 = vpop.f32.mrf.mxu0
        %532 = vdwg.mxu0
        %v533 = vpack.c.bf16 %v530, %v530
        %vm534 = vcmask 781312
        %535 = vst.msk [vmem:[#allocation4] sm:$0xf] %vm534, %v533
        %v536 = vld [vmem:[#allocation4] sm:$0xf]
        %v538 = vunpack.c.l.b16 %v536
        %v539 = vpack.c.b16 %v538, %v538
        %540 = vrot.lane.b32.xlu0 %v539, 96
        %v541 = vpop.permute.xlu0 %540
        %vm542 = vcmask 64512
        %v544 = vsel %vm542, %v536, 0
        %v547 = vsel %vm542, %v541, 0
        %549 = vmatpush.bf16.xpose.msra.mxu0 0
        %550 = vmatpush.bf16.xpose.msra.mxu0 0
        %551 = vmatpush.bf16.xpose.msra.mxu0 0
        %552 = vmatpush.bf16.xpose.msra.mxu0 0
        %553 = vmatpush.bf16.xpose.msra.mxu0 0
        %554 = vmatpush.bf16.xpose.msra.mxu0 0
        %555 = vmatpush.bf16.xpose.msra.mxu0 0
        %556 = vmatpush.bf16.xpose.msra.mxu0 %v547
        %557 = vmatmul.bf16.gmra.mxu0 %v544
        %v558 = vpop.f32.mrf.mxu0
        %v559 = vadd.f32 0.0, %v558
        %v560 = vpop.f32.mrf.mxu0
        %561 = vdwg.mxu0
        %v562 = vmul.f32 %v559, 0.35355338
        %v563 = vld [vmem:[%s389] sm:$0xf]
        %v564 = vunpack.c.l.bf16 %v563
        %v565 = vadd.f32 %v562, %v564
        %v566 = vsel %vm542, %v565, -inf
        %567 = vmax.xlane.f32.xlu0 %v566
        %v568 = vpop.xlane.xlu0 %567
        %v569 = vsub.f32 %v565, %v568
        %v570 = vmul.f32 %v569, 1.442695
        %v571 = vpow.pop %v570
        %v572 = vsel %vm542, %v571, 0.0
        %573 = vadd.xlane.f32.xlu0 %v572
        %v574 = vpop.xlane.xlu0 %573
        %v575 = vrcp.pop %v574
        %v576 = vmul.f32 %v571, %v575
        %v577 = vpack.c.bf16 %v576, %v576
        %578 = vrot.lane.b32.xlu0 %v539, 64
        %v579 = vpop.permute.xlu0 %578
        %v581 = vsel %vm542, %v577, 0
        %vm583 = vcmask 1043456
        %v585 = vsel %vm583, %v579, 0
        %587 = vmatpush.bf16.msra.mxu0 0
        %588 = vmatpush.bf16.msra.mxu0 0
        %589 = vmatpush.bf16.msra.mxu0 0
        %590 = vmatpush.bf16.msra.mxu0 0
        %591 = vmatpush.bf16.msra.mxu0 0
        %592 = vmatpush.bf16.msra.mxu0 0
        %593 = vmatpush.bf16.msra.mxu0 0
        %594 = vmatpush.bf16.msra.mxu0 %v585
        %595 = vmatmul.bf16.gmra.mxu0 %v581
        %v596 = vpop.f32.mrf.mxu0
        %v597 = vadd.f32 0.0, %v596
        %v598 = vpop.f32.mrf.mxu0
        %599 = vdwg.mxu0
        %v600 = vpack.c.bf16 %v597, %v597
        %vm601 = vcmask 60416
        %602 = vst.msk [vmem:[#allocation5] sm:$0xf] %vm601, %v600
        %v603 = vld [vmem:[#allocation4] sm:$0xf]
        %v605 = vunpack.c.l.b16 %v603
        %v606 = vpack.c.b16 %v605, %v605
        %607 = vrot.lane.b32.xlu0 %v606, 120
        %v608 = vpop.permute.xlu0 %607
        %609 = vrot.lane.b32.xlu0 %v606, 88
        %v610 = vpop.permute.xlu0 %609
        %v612 = vsel %vm542, %v608, 0
        %v615 = vsel %vm542, %v610, 0
        %617 = vmatpush.bf16.xpose.msra.mxu0 0
        %618 = vmatpush.bf16.xpose.msra.mxu0 0
        %619 = vmatpush.bf16.xpose.msra.mxu0 0
        %620 = vmatpush.bf16.xpose.msra.mxu0 0
        %621 = vmatpush.bf16.xpose.msra.mxu0 0
        %622 = vmatpush.bf16.xpose.msra.mxu0 0
        %623 = vmatpush.bf16.xpose.msra.mxu0 0
        %624 = vmatpush.bf16.xpose.msra.mxu0 %v615
        %625 = vmatmul.bf16.gmra.mxu0 %v612
        %v626 = vpop.f32.mrf.mxu0
        %v627 = vadd.f32 0.0, %v626
        %v628 = vpop.f32.mrf.mxu0
        %629 = vdwg.mxu0
        %v630 = vmul.f32 %v627, 0.35355338
        %s631 = scalar_lea.vmem %s389, 4 [#allocation9]
        %v632 = vld [vmem:[%s631] sm:$0xf]
        %v633 = vunpack.c.l.bf16 %v632
        %v634 = vadd.f32 %v630, %v633
        %v635 = vsel %vm542, %v634, -inf
        %636 = vmax.xlane.f32.xlu0 %v635
        %v637 = vpop.xlane.xlu0 %636
        %v638 = vsub.f32 %v634, %v637
        %v639 = vmul.f32 %v638, 1.442695
        %v640 = vpow.pop %v639
        %v641 = vsel %vm542, %v640, 0.0
        %642 = vadd.xlane.f32.xlu0 %v641
        %v643 = vpop.xlane.xlu0 %642
        %v644 = vrcp.pop %v643
        %v645 = vmul.f32 %v640, %v644
        %v646 = vpack.c.bf16 %v645, %v645
        %647 = vrot.lane.b32.xlu0 %v606, 56
        %v648 = vpop.permute.xlu0 %647
        %v650 = vsel %vm542, %v646, 0
        %v653 = vsel %vm583, %v648, 0
        %655 = vmatpush.bf16.msra.mxu0 0
        %656 = vmatpush.bf16.msra.mxu0 0
        %657 = vmatpush.bf16.msra.mxu0 0
        %658 = vmatpush.bf16.msra.mxu0 0
        %659 = vmatpush.bf16.msra.mxu0 0
        %660 = vmatpush.bf16.msra.mxu0 0
        %661 = vmatpush.bf16.msra.mxu0 0
        %662 = vmatpush.bf16.msra.mxu0 %v653
        %663 = vmatmul.bf16.gmra.mxu0 %v650
        %v664 = vpop.f32.mrf.mxu0
        %v665 = vadd.f32 0.0, %v664
        %v666 = vpop.f32.mrf.mxu0
        %667 = vdwg.mxu0
        %v668 = vpack.c.bf16 %v665, %v665
        %670 = vrot.lane.b32.xlu0 %v668, 8
        %v671 = vpop.permute.xlu0 %670
        %vm673 = vcmask 126016
        %674 = vst.msk [vmem:[#allocation5] sm:$0xf] %vm673, %v671
        %v675 = vld [vmem:[#allocation4] sm:$0xf]
        %v677 = vunpack.c.l.b16 %v675
        %v678 = vpack.c.b16 %v677, %v677
        %679 = vrot.lane.b32.xlu0 %v678, 112
        %v680 = vpop.permute.xlu0 %679
        %681 = vrot.lane.b32.xlu0 %v678, 80
        %v682 = vpop.permute.xlu0 %681
        %v684 = vsel %vm542, %v680, 0
        %v687 = vsel %vm542, %v682, 0
        %689 = vmatpush.bf16.xpose.msra.mxu0 0
        %690 = vmatpush.bf16.xpose.msra.mxu0 0
        %691 = vmatpush.bf16.xpose.msra.mxu0 0
        %692 = vmatpush.bf16.xpose.msra.mxu0 0
        %693 = vmatpush.bf16.xpose.msra.mxu0 0
        %694 = vmatpush.bf16.xpose.msra.mxu0 0
        %695 = vmatpush.bf16.xpose.msra.mxu0 0
        %696 = vmatpush.bf16.xpose.msra.mxu0 %v687
        %697 = vmatmul.bf16.gmra.mxu0 %v684
        %v698 = vpop.f32.mrf.mxu0
        %v699 = vadd.f32 0.0, %v698
        %v700 = vpop.f32.mrf.mxu0
        %701 = vdwg.mxu0
        %v702 = vmul.f32 %v699, 0.35355338
        %s703 = scalar_lea.vmem %s389, 8 [#allocation9]
        %v704 = vld [vmem:[%s703] sm:$0xf]
        %v705 = vunpack.c.l.bf16 %v704
        %v706 = vadd.f32 %v702, %v705
        %v707 = vsel %vm542, %v706, -inf
        %708 = vmax.xlane.f32.xlu0 %v707
        %v709 = vpop.xlane.xlu0 %708
        %v710 = vsub.f32 %v706, %v709
        %v711 = vmul.f32 %v710, 1.442695
        %v712 = vpow.pop %v711
        %v713 = vsel %vm542, %v712, 0.0
        %714 = vadd.xlane.f32.xlu0 %v713
        %v715 = vpop.xlane.xlu0 %714
        %v716 = vrcp.pop %v715
        %v717 = vmul.f32 %v712, %v716
        %v718 = vpack.c.bf16 %v717, %v717
        %719 = vrot.lane.b32.xlu0 %v678, 48
        %v720 = vpop.permute.xlu0 %719
        %v722 = vsel %vm542, %v718, 0
        %v725 = vsel %vm583, %v720, 0
        %727 = vmatpush.bf16.msra.mxu0 0
        %728 = vmatpush.bf16.msra.mxu0 0
        %729 = vmatpush.bf16.msra.mxu0 0
        %730 = vmatpush.bf16.msra.mxu0 0
        %731 = vmatpush.bf16.msra.mxu0 0
        %732 = vmatpush.bf16.msra.mxu0 0
        %733 = vmatpush.bf16.msra.mxu0 0
        %734 = vmatpush.bf16.msra.mxu0 %v725
        %735 = vmatmul.bf16.gmra.mxu0 %v722
        %v736 = vpop.f32.mrf.mxu0
        %v737 = vadd.f32 0.0, %v736
        %v738 = vpop.f32.mrf.mxu0
        %739 = vdwg.mxu0
        %v740 = vpack.c.bf16 %v737, %v737
        %742 = vrot.lane.b32.xlu0 %v740, 16
        %v743 = vpop.permute.xlu0 %742
        %vm745 = vcmask 191616
        %746 = vst.msk [vmem:[#allocation5] sm:$0xf] %vm745, %v743
        %v747 = vld [vmem:[#allocation4] sm:$0xf]
        %v749 = vunpack.c.l.b16 %v747
        %v750 = vpack.c.b16 %v749, %v749
        %751 = vrot.lane.b32.xlu0 %v750, 104
        %v752 = vpop.permute.xlu0 %751
        %753 = vrot.lane.b32.xlu0 %v750, 72
        %v754 = vpop.permute.xlu0 %753
        %v756 = vsel %vm542, %v752, 0
        %v759 = vsel %vm542, %v754, 0
        %761 = vmatpush.bf16.xpose.msra.mxu0 0
        %762 = vmatpush.bf16.xpose.msra.mxu0 0
        %763 = vmatpush.bf16.xpose.msra.mxu0 0
        %764 = vmatpush.bf16.xpose.msra.mxu0 0
        %765 = vmatpush.bf16.xpose.msra.mxu0 0
        %766 = vmatpush.bf16.xpose.msra.mxu0 0
        %767 = vmatpush.bf16.xpose.msra.mxu0 0
        %768 = vmatpush.bf16.xpose.msra.mxu0 %v759
        %769 = vmatmul.bf16.gmra.mxu0 %v756
        %v770 = vpop.f32.mrf.mxu0
        %v771 = vadd.f32 0.0, %v770
        %v772 = vpop.f32.mrf.mxu0
        %773 = vdwg.mxu0
        %v774 = vmul.f32 %v771, 0.35355338
        %s775 = scalar_lea.vmem %s389, 12 [#allocation9]
        %v776 = vld [vmem:[%s775] sm:$0xf]
        %v777 = vunpack.c.l.bf16 %v776
        %v778 = vadd.f32 %v774, %v777
        %v779 = vsel %vm542, %v778, -inf
        %780 = vmax.xlane.f32.xlu0 %v779
        %v781 = vpop.xlane.xlu0 %780
        %v782 = vsub.f32 %v778, %v781
        %v783 = vmul.f32 %v782, 1.442695
        %v784 = vpow.pop %v783
        %v785 = vsel %vm542, %v784, 0.0
        %786 = vadd.xlane.f32.xlu0 %v785
        %v787 = vpop.xlane.xlu0 %786
        %v788 = vrcp.pop %v787
        %v789 = vmul.f32 %v784, %v788
        %v790 = vpack.c.bf16 %v789, %v789
        %791 = vrot.lane.b32.xlu0 %v750, 40
        %v792 = vpop.permute.xlu0 %791
        %v794 = vsel %vm542, %v790, 0
        %v797 = vsel %vm583, %v792, 0
        %799 = vmatpush.bf16.msra.mxu0 0
        %800 = vmatpush.bf16.msra.mxu0 0
        %801 = vmatpush.bf16.msra.mxu0 0
        %802 = vmatpush.bf16.msra.mxu0 0
        %803 = vmatpush.bf16.msra.mxu0 0
        %804 = vmatpush.bf16.msra.mxu0 0
        %805 = vmatpush.bf16.msra.mxu0 0
        %806 = vmatpush.bf16.msra.mxu0 %v797
        %807 = vmatmul.bf16.gmra.mxu0 %v794
        %v808 = vpop.f32.mrf.mxu0
        %v809 = vadd.f32 0.0, %v808
        %v810 = vpop.f32.mrf.mxu0
        %811 = vdwg.mxu0
        %v812 = vpack.c.bf16 %v809, %v809
        %814 = vrot.lane.b32.xlu0 %v812, 24
        %v815 = vpop.permute.xlu0 %814
        %vm817 = vcmask 257216
        %818 = vst.msk [vmem:[#allocation5] sm:$0xf] %vm817, %v815
        %v819 = vld [vmem:[#allocation3] sm:$0xff]
        %v820 = vld [vmem:[#allocation5] sm:$0xf]
        %v821 = vld [vmem:[#allocation12] sm:$0xf]
        %v822 = vld [vmem:[#allocation12 + $0x4] sm:$0xf]
        %v823 = vld [vmem:[#allocation12 + $0x8] sm:$0xf]
        %v824 = vld [vmem:[#allocation12 + $0xc] sm:$0xf]
        %v829 = vunpack.c.l.b16 %v821
        %v830 = vunpack.c.l.b16 %v822
        %v831 = vunpack.c.l.b16 %v823
        %v832 = vunpack.c.l.b16 %v824
        %v833 = vpack.c.b16 %v830, %v829
        %v834 = vpack.c.b16 %v832, %v831
        %v838 = vsel %vm516, %v820, 0
        %840 = vmatpush.bf16.msra.mxu0 0
        %841 = vmatpush.bf16.msra.mxu0 0
        %842 = vmatpush.bf16.msra.mxu0 0
        %843 = vmatpush.bf16.msra.mxu0 0
        %844 = vmatpush.bf16.msra.mxu0 0
        %845 = vmatpush.bf16.msra.mxu0 0
        %846 = vmatpush.bf16.msra.mxu0 %v834
        %847 = vmatpush.bf16.msra.mxu0 %v833
        %848 = vmatmul.bf16.gmra.mxu0 %v838
        %v849 = vpop.f32.mrf.mxu0
        %v850 = vadd.f32 0.0, %v849
        %v851 = vpop.f32.mrf.mxu0
        %852 = vdwg.mxu0
        %v853 = vadd.f32 %v819, %v850
        %854 = vst.msk [vmem:[#allocation3] sm:$0xff] %vm516, %v853
        // Predicated region
        $region73: #{tpu_custom_call.1} parent=51 // pred_check
          %p855 = pneg %p446
        $region74: #{tpu_custom_call.1} parent=51 // pred_check_branch
          %857 = sbr.rel (%p855) target = $region76
        $region75: #{tpu_custom_call.1} parent=51 // pred_region
          %v858 = vld [vmem:[%s379] sm:$0xff]
          %v859 = vld [vmem:[#allocation3] sm:$0xff]
          %v860 = vadd.f32 %v858, %v859
          %v861 = vld [vmem:[%s7] sm:$0x1]
          %v863 = vperm.slane %v861, 0
          %v865 = vadd.f32 %v860, %v863
          %866 = vst.msk [vmem:[%s440] sm:$0xff] %vm516, %v865
        $region76: #{tpu_custom_call.1} parent=51 // pred_fallthru
          _
        %s867 = sand.u32 %s244, 1
        %s868 = scalar_lea.sflag [#allocation8], %s867
        %s869 = sand.u32 %s244, 1
        %s870 = smul.addr %s869, 8
        %s871 = scalar_lea.vmem [#allocation14], %s870
        // Predicated region
        $region77: #{tpu_custom_call.1} parent=51 // pred_check
          %p872 = pneg %p254
        $region78: #{tpu_custom_call.1} parent=51 // pred_check_branch
          %874 = sbr.rel (%p872) target = $region80
        $region79: #{tpu_custom_call.1} parent=51 // pred_region
          %876 = vsyncadd %s868, 0
          %s877 = smul.addr %s33, 8
          %s878 = scalar_lea.hbm %s8, %s877
          %s880 = sshll.u32 %s871, 4
          %s881 = int_to_ptr.vmem [resolvable:$true] %s880
          %s882 = sshll.u32 %s878, 4
          %s883 = int_to_ptr.hbm [resolvable:$true] %s882
          %885 = dma.vmem_to_hbm [thread:$0]  %s881, 128, %s883, %s868
        $region80: #{tpu_custom_call.1} parent=51 // pred_fallthru
          _
      $region52: #{tpu_custom_call.1} parent=5 // pred_fallthru
        _
      %p886 = scmp.le.s32.totalorder 2, %s24
      // Predicated region
      $region81: #{tpu_custom_call.1} parent=5 // pred_check
        %p887 = pneg %p886
      $region82: #{tpu_custom_call.1} parent=5 // pred_check_branch
        %889 = sbr.rel (%p887) target = $region84
      $region83: #{tpu_custom_call.1} parent=5 // pred_region
        %s890 = ssub.s32 %s24, 2
        // Predicated region
        $region85: #{tpu_custom_call.1} parent=83 // pred_check
          %p891 = pneg %p260
        $region86: #{tpu_custom_call.1} parent=83 // pred_check_branch
          %893 = sbr.rel (%p891) target = $region88
        $region87: #{tpu_custom_call.1} parent=83 // pred_region
          %s894 = sand.u32 %s245, 1
          %s895 = scalar_lea.sflag [#allocation8], %s894
          %s896 = sand.u32 %s245, 1
          %s897 = smul.addr %s896, 8
          %s898 = scalar_lea.vmem [#allocation14], %s897
          %900 = dma.done %s895, 128
        $region88: #{tpu_custom_call.1} parent=83 // pred_fallthru
          _
      $region84: #{tpu_custom_call.1} parent=5 // pred_fallthru
        _
    $region6: #{tpu_custom_call.1} parent=1 // loop_footer
      %s28 = sadd.s32 1, %s24
    $region7: #{tpu_custom_call.1} parent=1 // loop_footer_branch
      %23 = sbr.rel target = $region3
    $region8: #{tpu_custom_call.1} parent=1 // loop_exit
      _
    %901 = vsyncpa [#allocation7], 1
    %s902 = scalar_lea.sflag [#allocation7], 1
    %903 = vsyncpa %s902, 1
    %904 = vsyncpa [#allocation10], 1
    %s905 = scalar_lea.sflag [#allocation10], 1
    %906 = vsyncpa %s905, 1
    %907 = vsyncpa [#allocation13], 1
    %908 = vsyncpa [#allocation8], 1
    %s909 = scalar_lea.sflag [#allocation8], 1
    %910 = vsyncpa %s909, 1

</llo_original>
